<compile_context>
chip_gen: v5e
topology: v5e:2x2
jax: 0.10.0
libtpu: 0.0.40
codegen_flags: <defaults>
</compile_context>

<pallas_src>
import math
import jax
import jax.numpy as jnp
from jax.experimental import pallas as pl
from jax.experimental.pallas import tpu as pltpu

BN_EPS = 1e-5


# ---------------------------------------------------------------------------
# Kernel A: y = adj @ support, tiled over (row tiles i, adj-column tiles k).
# Last-k epilogue writes y (bf16) and per-row-tile column sum / sum-of-squares.
# ---------------------------------------------------------------------------
def adj_matmul_kernel(adj_ref, sup_ref, y_ref, psum_ref, psq_ref, acc_ref):
    k = pl.program_id(1)

    @pl.when(k == 0)
    def _():
        acc_ref[...] = jnp.zeros_like(acc_ref)

    # (tm, tk) bf16 @ (tk, Foutp) bf16 -> f32 accumulate on the MXU.
    acc_ref[...] += jnp.dot(adj_ref[...], sup_ref[...],
                            preferred_element_type=jnp.float32)

    @pl.when(k == pl.num_programs(1) - 1)
    def _():
        acc = acc_ref[...]
        y_ref[...] = acc.astype(y_ref.dtype)
        s = jnp.sum(acc, axis=0, keepdims=True)            # (1, Foutp)
        sq = jnp.sum(acc * acc, axis=0, keepdims=True)     # (1, Foutp)
        psum_ref[...] = s[None, :, :]                      # (1, 1, Foutp)
        psq_ref[...] = sq[None, :, :]


# ---------------------------------------------------------------------------
# Kernel C: fused BatchNorm (as scale/shift) + tanh.  bf16 in, f32 out.
# ---------------------------------------------------------------------------
def bn_act_kernel(y_ref, scale_ref, shift_ref, o_ref):
    y = y_ref[...].astype(jnp.float32)
    o_ref[...] = jnp.tanh(y * scale_ref[...] + shift_ref[...]).astype(o_ref.dtype)


# ---------------------------------------------------------------------------
# Wrapper
# ---------------------------------------------------------------------------
def graph_convolution(x, adj, weight, gamma, beta, *, tm=512, tk=2048):
    """x: (N, Fin) f32, adj: (N, N) f32, weight: (Fin, Fout) f32,
    gamma/beta: (Fout,) or (1, Fout) f32. Returns (N, Fout) f32."""
    n, fin = x.shape
    fout = weight.shape[1]
    assert adj.shape == (n, n)

    # Lane-dense output: pad Fout up to a multiple of 128.
    foutp = pl.cdiv(fout, 128) * 128

    # Tile selection: keep >= 2 row tiles so both v7x TensorCores get work.
    tm = min(tm, n)
    if n >= 16 and tm > n // 2:
        tm = n // 2
    tk = min(tk, n)
    assert n % tm == 0 and n % tk == 0, "N must be divisible by the tile sizes"
    assert tm % 8 == 0, "row tile must be a multiple of 8"
    assert tk == n or tk % 128 == 0, "adj column tile must be lane-aligned"
    n_rt = n // tm

    # support = x @ W in XLA (tiny), lane-dense-padded, streamed as bf16.
    w_p = jnp.zeros((fin, foutp), jnp.float32).at[:, :fout].set(
        weight.astype(jnp.float32))
    support = jnp.dot(x.astype(jnp.float32), w_p,
                      precision=jax.lax.Precision.HIGHEST).astype(jnp.bfloat16)
    adj_bf = adj.astype(jnp.bfloat16)
    # TODO(synk): on v7x the adj stream could be narrowed further to fp8 (e4m3)
    # for ~2x fewer HBM bytes; kept bf16 here for one generation-agnostic path.

    # Explicit VMEM budget: double-buffered adj/support/y tiles + f32 acc scratch.
    vmem_est = (2 * tm * tk * 2          # adj tiles (bf16, double-buffered)
                + 2 * tk * foutp * 2     # support tiles (bf16)
                + 2 * tm * foutp * 2     # y output tiles (bf16)
                + tm * foutp * 4         # f32 accumulator scratch
                + 8 * 4 * foutp)         # stats blocks
    vmem_limit = int(min(max(2 * vmem_est, 16 << 20), 48 << 20))

    # --- Kernel A: y = adj @ support, fused column stats ------------------
    y, psum, psq = pl.pallas_call(
        adj_matmul_kernel,
        out_shape=(jax.ShapeDtypeStruct((n, foutp), jnp.bfloat16),
                   jax.ShapeDtypeStruct((n_rt, 1, foutp), jnp.float32),
                   jax.ShapeDtypeStruct((n_rt, 1, foutp), jnp.float32)),
        grid_spec=pltpu.PrefetchScalarGridSpec(
            num_scalar_prefetch=0,
            grid=(n_rt, n // tk),
            in_specs=[
                pl.BlockSpec((tm, tk), lambda i, k: (i, k)),      # adj tile
                pl.BlockSpec((tk, foutp), lambda i, k: (k, 0)),   # support slab
            ],
            out_specs=[
                pl.BlockSpec((tm, foutp), lambda i, k: (i, 0)),
                pl.BlockSpec((1, 1, foutp), lambda i, k: (i, 0, 0)),
                pl.BlockSpec((1, 1, foutp), lambda i, k: (i, 0, 0)),
            ],
            scratch_shapes=[pltpu.VMEM((tm, foutp), jnp.float32)]),
        compiler_params=pltpu.CompilerParams(
            dimension_semantics=("parallel", "arbitrary"),
            vmem_limit_bytes=vmem_limit),
    )(adj_bf, support)

    # Tiny O(Fout) epilogue in XLA: fold BN (training-mode batch stats, biased
    # variance) into one scale/shift vector.
    col_sum = jnp.sum(psum, axis=(0, 1))
    col_sq = jnp.sum(psq, axis=(0, 1))
    mean = col_sum * (1.0 / n)
    var = jnp.maximum(col_sq * (1.0 / n) - mean * mean, 0.0)
    inv_std = jax.lax.rsqrt(var + BN_EPS)
    gamma_p = jnp.zeros((foutp,), jnp.float32).at[:fout].set(
        jnp.reshape(gamma, (fout,)).astype(jnp.float32))
    beta_p = jnp.zeros((foutp,), jnp.float32).at[:fout].set(
        jnp.reshape(beta, (fout,)).astype(jnp.float32))
    scale = (gamma_p * inv_std).reshape(1, foutp)
    shift = (beta_p - mean * gamma_p * inv_std).reshape(1, foutp)

    # --- Kernel C: scale/shift + tanh --------------------------------------
    out_p = pl.pallas_call(
        bn_act_kernel,
        out_shape=jax.ShapeDtypeStruct((n, foutp), jnp.float32),
        grid_spec=pltpu.PrefetchScalarGridSpec(
            num_scalar_prefetch=0,
            grid=(n_rt,),
            in_specs=[
                pl.BlockSpec((tm, foutp), lambda i: (i, 0)),
                pl.BlockSpec((1, foutp), lambda i: (0, 0)),
                pl.BlockSpec((1, foutp), lambda i: (0, 0)),
            ],
            out_specs=pl.BlockSpec((tm, foutp), lambda i: (i, 0))),
        compiler_params=pltpu.CompilerParams(
            dimension_semantics=("parallel",),
            vmem_limit_bytes=vmem_limit),
    )(y, scale, shift)

    return out_p[:, :fout]


if __name__ == "__main__":
    # Small shapes consistent with the module: N nodes, Fin -> Fout features.
    N, FIN, FOUT = 512, 32, 64

    key = jax.random.PRNGKey(0)
    kx, ka, kw = jax.random.split(key, 3)

    x = jax.random.normal(kx, (N, FIN), dtype=jnp.float32)
    # Dense row-normalized "adjacency" (torch.spmm with a dense adj == matmul).
    adj_raw = (jax.random.uniform(ka, (N, N)) > 0.8).astype(jnp.float32)
    adj_raw = adj_raw + jnp.eye(N, dtype=jnp.float32)
    adj = adj_raw / jnp.sum(adj_raw, axis=1, keepdims=True)

    # reset_parameters(): U(-stdv, stdv) with stdv = 1/sqrt(out_features).
    stdv = 1.0 / math.sqrt(FOUT)
    weight = jax.random.uniform(kw, (FIN, FOUT), minval=-stdv, maxval=stdv,
                                dtype=jnp.float32)
    # BatchNorm1d affine params at defaults (gamma=1, beta=0); bias=False path.
    gamma = jnp.ones((FOUT,), dtype=jnp.float32)
    beta = jnp.zeros((FOUT,), dtype=jnp.float32)

    # tm is capped to N//2 = 256 (two "parallel" row tiles), tk clamps to N.
    out = graph_convolution(x, adj, weight, gamma, beta)
    jax.block_until_ready(out)

    # Pure-JAX reference on the same bf16-rounded streamed operands, with
    # HIGHEST-precision f32 matmuls (JAX's default f32 matmul precision on TPU
    # is lower).  Tolerance also covers the deliberate bf16 storage of y.
    support_r = jnp.dot(x, weight, precision=jax.lax.Precision.HIGHEST)
    support_r = support_r.astype(jnp.bfloat16).astype(jnp.float32)
    adj_r = adj.astype(jnp.bfloat16).astype(jnp.float32)
    y_r = jnp.dot(adj_r, support_r, precision=jax.lax.Precision.HIGHEST)
    mu = y_r.mean(axis=0, keepdims=True)
    var = ((y_r - mu) ** 2).mean(axis=0, keepdims=True)
    ref = jnp.tanh((y_r - mu) / jnp.sqrt(var + BN_EPS) * gamma[None, :]
                   + beta[None, :])

    assert out.shape == (N, FOUT)
    assert jnp.allclose(out, ref, atol=2e-2, rtol=2e-2), "mismatch vs reference"

    # TODO(synk): BatchNorm1d running_mean/running_var buffer updates (a
    # training-time side effect that does not change this forward output) are
    # not modeled.
    print("KERNEL_OK")
</pallas_src>

<mosaic_0001>
module attributes {stable_mosaic.version = 11 : i64} {
  func.func @adj_matmul_kernel(%arg0: i32, %arg1: i32, %arg2: memref<256x512xbf16, #tpu.memory_space<vmem>>, %arg3: memref<512x128xbf16, #tpu.memory_space<vmem>>, %arg4: memref<256x128xbf16, #tpu.memory_space<vmem>>, %arg5: memref<1x1x128xf32, #tpu.memory_space<vmem>>, %arg6: memref<1x1x128xf32, #tpu.memory_space<vmem>>, %arg7: memref<256x128xf32, #tpu.memory_space<vmem>>) attributes {dimension_semantics = [#tpu.dimension_semantics<parallel>, #tpu.dimension_semantics<arbitrary>], iteration_bounds = array<i64: 2, 1>, scalar_prefetch = 0 : i64, scratch_operands = 1 : i64, tpu.core_type = #tpu.core_type<tc>, window_params = [{transform_indices = @transform_0, window_bounds = array<i64: 256, 512>}, {transform_indices = @transform_1, window_bounds = array<i64: 512, 128>}, {transform_indices = @transform_2, window_bounds = array<i64: 256, 128>}, {transform_indices = @transform_3, window_bounds = array<i64: 1, 1, 128>}, {transform_indices = @transform_4, window_bounds = array<i64: 1, 1, 128>}]} {
    %c0_i32 = arith.constant 0 : i32
    %0 = arith.cmpi eq, %arg1, %c0_i32 : i32
    %1 = arith.extui %0 : i1 to i32
    %c0_i32_0 = arith.constant 0 : i32
    %2 = arith.cmpi ne, %1, %c0_i32_0 : i32
    scf.if %2 {
      %cst_10 = arith.constant 0.000000e+00 : f32
      %12 = vector.broadcast %cst_10 : f32 to vector<256x128xf32>
      %c0_11 = arith.constant 0 : index
      %c0_12 = arith.constant 0 : index
      %13 = vector.load %arg7[%c0_11, %c0_12] : memref<256x128xf32, #tpu.memory_space<vmem>>, vector<256x128xf32>
      tpu.vector_store %arg7[%c0_11, %c0_12], %12 {strides = array<i32>} : memref<256x128xf32, #tpu.memory_space<vmem>>, vector<256x128xf32>,
    } else {
    }
    %c0 = arith.constant 0 : index
    %c0_1 = arith.constant 0 : index
    %3 = vector.load %arg7[%c0, %c0_1] : memref<256x128xf32, #tpu.memory_space<vmem>>, vector<256x128xf32>
    %c0_2 = arith.constant 0 : index
    %c0_3 = arith.constant 0 : index
    %4 = vector.load %arg2[%c0_2, %c0_3] : memref<256x512xbf16, #tpu.memory_space<vmem>>, vector<256x512xbf16>
    %c0_4 = arith.constant 0 : index
    %c0_5 = arith.constant 0 : index
    %5 = vector.load %arg3[%c0_4, %c0_5] : memref<512x128xbf16, #tpu.memory_space<vmem>>, vector<512x128xbf16>
    %cst = arith.constant dense<0.000000e+00> : vector<256x128xf32>
    %6 = tpu.matmul %4, %5, %cst {dimension_numbers = #tpu.dot_dimension_numbers<[1], [0], [0], [1], [0, 0, 1, 1], [], []>} : vector<256x512xbf16>, vector<512x128xbf16>, vector<256x128xf32> -> vector<256x128xf32>
    %7 = arith.addf %3, %6 : vector<256x128xf32>
    %c0_6 = arith.constant 0 : index
    %c0_7 = arith.constant 0 : index
    %8 = vector.load %arg7[%c0_6, %c0_7] : memref<256x128xf32, #tpu.memory_space<vmem>>, vector<256x128xf32>
    tpu.vector_store %arg7[%c0_6, %c0_7], %7 {strides = array<i32>} : memref<256x128xf32, #tpu.memory_space<vmem>>, vector<256x128xf32>,
    %c0_i32_8 = arith.constant 0 : i32
    %9 = arith.cmpi eq, %arg1, %c0_i32_8 : i32
    %10 = arith.extui %9 : i1 to i32
    %c0_i32_9 = arith.constant 0 : i32
    %11 = arith.cmpi ne, %10, %c0_i32_9 : i32
    scf.if %11 {
      %c0_10 = arith.constant 0 : index
      %c0_11 = arith.constant 0 : index
      %12 = vector.load %arg7[%c0_10, %c0_11] : memref<256x128xf32, #tpu.memory_space<vmem>>, vector<256x128xf32>
      %13 = arith.truncf %12 : vector<256x128xf32> to vector<256x128xbf16>
      %c0_12 = arith.constant 0 : index
      %c0_13 = arith.constant 0 : index
      %14 = vector.load %arg4[%c0_12, %c0_13] : memref<256x128xbf16, #tpu.memory_space<vmem>>, vector<256x128xbf16>
      tpu.vector_store %arg4[%c0_12, %c0_13], %13 {strides = array<i32>} : memref<256x128xbf16, #tpu.memory_space<vmem>>, vector<256x128xbf16>,
      %cst_14 = arith.constant dense<0.000000e+00> : vector<128xf32>
      %15 = vector.multi_reduction <add>, %12, %cst_14 [0] : vector<256x128xf32> to vector<128xf32>
      %16 = vector.shape_cast %15 : vector<128xf32> to vector<1x128xf32>
      %17 = arith.mulf %12, %12 : vector<256x128xf32>
      %cst_15 = arith.constant dense<0.000000e+00> : vector<128xf32>
      %18 = vector.multi_reduction <add>, %17, %cst_15 [0] : vector<256x128xf32> to vector<128xf32>
      %19 = vector.shape_cast %18 : vector<128xf32> to vector<1x128xf32>
      %20 = vector.shape_cast %16 : vector<1x128xf32> to vector<1x1x128xf32>
      %c0_16 = arith.constant 0 : index
      %c0_17 = arith.constant 0 : index
      %c0_18 = arith.constant 0 : index
      %21 = vector.load %arg5[%c0_16, %c0_17, %c0_18] : memref<1x1x128xf32, #tpu.memory_space<vmem>>, vector<1x1x128xf32>
      tpu.vector_store %arg5[%c0_16, %c0_17, %c0_18], %20 {strides = array<i32>} : memref<1x1x128xf32, #tpu.memory_space<vmem>>, vector<1x1x128xf32>,
      %22 = vector.shape_cast %19 : vector<1x128xf32> to vector<1x1x128xf32>
      %c0_19 = arith.constant 0 : index
      %c0_20 = arith.constant 0 : index
      %c0_21 = arith.constant 0 : index
      %23 = vector.load %arg6[%c0_19, %c0_20, %c0_21] : memref<1x1x128xf32, #tpu.memory_space<vmem>>, vector<1x1x128xf32>
      tpu.vector_store %arg6[%c0_19, %c0_20, %c0_21], %22 {strides = array<i32>} : memref<1x1x128xf32, #tpu.memory_space<vmem>>, vector<1x1x128xf32>,
    } else {
    }
    return
  }
  func.func @transform_0(%arg0: i32, %arg1: i32) -> (i32, i32) {
    %c0_i32 = arith.constant 0 : i32
    return %arg0, %arg1 : i32, i32
  }
  func.func @transform_1(%arg0: i32, %arg1: i32) -> (i32, i32) {
    %c0_i32 = arith.constant 0 : i32
    %c0_i32_0 = arith.constant 0 : i32
    return %arg1, %c0_i32 : i32, i32
  }
  func.func @transform_2(%arg0: i32, %arg1: i32) -> (i32, i32) {
    %c0_i32 = arith.constant 0 : i32
    %c0_i32_0 = arith.constant 0 : i32
    return %arg0, %c0_i32 : i32, i32
  }
  func.func @transform_3(%arg0: i32, %arg1: i32) -> (i32, i32, i32) {
    %c0_i32 = arith.constant 0 : i32
    %c0_i32_0 = arith.constant 0 : i32
    %c0_i32_1 = arith.constant 0 : i32
    return %arg0, %c0_i32, %c0_i32_0 : i32, i32, i32
  }
  func.func @transform_4(%arg0: i32, %arg1: i32) -> (i32, i32, i32) {
    %c0_i32 = arith.constant 0 : i32
    %c0_i32_0 = arith.constant 0 : i32
    %c0_i32_1 = arith.constant 0 : i32
    return %arg0, %c0_i32, %c0_i32_0 : i32, i32, i32
  }
}

</mosaic_0001>

<llo_original>
// kernel: tpu_custom_call.1
$region0: #{tpu_custom_call.1}
  #allocation0 [shape = 'u32[]', space=smem, size = 0x4, offset = 0x4, fixed_abs, tag = 'smem constant byte address 0x4 - core index']
  #allocation1 [shape = 'u32[72,128]{1,0:T(1,128)}', space=vmem, size = 0x9000, scoped, tag = 'internal scratch']
  #allocation2 [shape = 'f32[256,128]{1,0:T(8,128)}', space=vmem, size = 0x20000, scoped, tag = 'scratch operand']
  %s0 = inlined_call_operand.hbm [shape: bf16[512,512], index: 0, kind: input, shape index: {}]
  %s1 = inlined_call_operand.hbm [shape: bf16[512,128], index: 1, kind: input, shape index: {}]
  %s2 = inlined_call_operand.hbm [shape: bf16[512,128], index: 2, kind: output, shape index: {0}]
  %s3 = inlined_call_operand.hbm [shape: f32[2,1,128], index: 3, kind: output, shape index: {1}]
  %s4 = inlined_call_operand.hbm [shape: f32[2,1,128], index: 4, kind: output, shape index: {2}]
  %5 = xla_tuple %s2, %s3, %s4
  %s6 = sld [smem:[#allocation0]]
  $region73: #{tpu_custom_call.1} parent=0
    _
  %s8 = ssub.s32 1, %s6
  %s9 = scalar_select 0, %s8, %s6
  $region1: #{tpu_custom_call.1} parent=0
    #allocation3 [shape = 'u8[524288]{0}', space=vmem, size = 0x80000, scoped, tag = 'input window, operand 0']
    #allocation4 [shape = 's32[2]{0}', space=sflag, size = 0x8, scoped, tag = 'scoped memory for tpu_custom_call.1']
    #allocation5 [shape = 's32[2]{0}', space=sflag, size = 0x8, scoped, tag = 'scoped memory for tpu_custom_call.1']
    #allocation6 [shape = 'u8[131072]{0}', space=vmem, size = 0x20000, scoped, tag = 'input window, operand 1, single buffered']
    #allocation7 [shape = 's32[1]{0}', space=sflag, size = 0x4, scoped, tag = 'scoped memory for tpu_custom_call.1']
    #allocation8 [shape = 'u8[131072]{0}', space=vmem, size = 0x20000, scoped, tag = 'output window, operand 0']
    #allocation9 [shape = 'u8[1024]{0}', space=vmem, size = 0x400, scoped, tag = 'output window, operand 1']
    #allocation10 [shape = 's32[2]{0}', space=sflag, size = 0x8, scoped, tag = 'scoped memory for tpu_custom_call.1']
    #allocation11 [shape = 'u8[1024]{0}', space=vmem, size = 0x400, scoped, tag = 'output window, operand 2']
    %10 = vsyncpa [#allocation4], 0
    %s11 = scalar_lea.sflag [#allocation4], 1
    %12 = vsyncpa %s11, 0
    %13 = vsyncpa [#allocation7], 0
    %14 = vsyncpa [#allocation5], 0
    %s15 = scalar_lea.sflag [#allocation5], 1
    %16 = vsyncpa %s15, 0
    %17 = vsyncpa [#allocation10], 0
    %s18 = scalar_lea.sflag [#allocation10], 1
    %19 = vsyncpa %s18, 0
    loop: start=0, step=1, limit=4
    $region2: #{tpu_custom_call.1} parent=1 // loop_pre_header
      _
    $region3: #{tpu_custom_call.1} parent=1 // loop_header
      %s21 = sphi 0, %s25
      %p22 = scmp.ge.s32.totalorder %s21, 4
      %s28 = sphi 0, %s40
      %s29 = sphi 0, %s36
      %s30 = sphi 0, %s28
      %s31 = sphi 0, %s29
      %s32 = sphi 0, %s30
      %s33 = sphi 0, %s31
      %s45 = sphi 0, %s47
      %s48 = sphi 0, %s45
      %s49 = sphi 0, %s48
      %s65 = sphi 0, %s49
      %s71 = sphi 0, %s73
      %s74 = sphi 0, %s71
      %s75 = sphi 0, %s74
      %s91 = sphi 0, %s75
      %s97 = sphi 0, %s99
      %s100 = sphi 0, %s97
      %s101 = sphi 0, %s100
      %s117 = sphi 0, %s101
      %s123 = sphi 0, %s125
      %s126 = sphi 0, %s123
      %s127 = sphi 0, %s126
      %s143 = sphi 0, %s127
      %s149 = sphi 0, %s151
      %s152 = sphi 0, %s149
      %s153 = sphi 0, %s152
      %s169 = sphi 0, %s153
    $region4: #{tpu_custom_call.1} parent=1 // loop_header_branch
      %24 = sbr.rel (%p22) target = $region8
    $region5: #{tpu_custom_call.1} parent=1 // loop_body
      %s26 = ssub.s32 %s21, 1
      %s27 = ssub.s32 %s21, 2
      %s34 = sadd.s32 1, %s29
      %p35 = scmp.ge.s32.totalorder %s34, 1
      %s36 = scalar_select %p35, 0, %s34
      %s37 = sadd.s32 1, %s28
      %s38 = scalar_select %p35, %s37, %s28
      %p39 = scmp.ge.s32.totalorder %s38, 2
      %s40 = scalar_select %p39, 0, %s38
      %s41 = ssub.s32 %s28, %s40
      %s42 = ssub.s32 %s29, %s36
      %s43 = sor.u32 %s41, %s42
      %p44 = scmp.eq.s32.totalorder %s43, 0
      %s46 = sadd.s32 %s45, 1
      %s47 = scalar_select %p44, %s45, %s46
      %p50 = pneg %p44
      %p51 = scmp.eq.s32.totalorder %s21, 1
      %p52 = por %p50, %p51
      %p53 = scmp.ne.s32.totalorder %s45, %s48
      %p54 = scmp.eq.s32.totalorder %s21, 0
      %p55 = por %p53, %p54
      %p56 = scmp.ne.s32.totalorder %s45, %s48
      %p57 = scmp.eq.s32.totalorder %s26, 1
      %p58 = por %p56, %p57
      %p59 = scmp.ne.s32.totalorder %s48, %s49
      %p60 = scmp.eq.s32.totalorder %s26, 0
      %p61 = por %p59, %p60
      %p62 = scmp.ne.s32.totalorder %s48, %s49
      %p63 = scmp.eq.s32.totalorder %s27, 1
      %p64 = por %p62, %p63
      %p66 = scmp.ne.s32.totalorder %s49, %s65
      %p67 = scmp.eq.s32.totalorder %s27, 0
      %p68 = por %p66, %p67
      %s69 = ssub.s32 %s29, %s36
      %p70 = scmp.eq.s32.totalorder %s69, 0
      %s72 = sadd.s32 %s71, 1
      %s73 = scalar_select %p70, %s71, %s72
      %p76 = pneg %p70
      %p77 = scmp.eq.s32.totalorder %s21, 1
      %p78 = por %p76, %p77
      %p79 = scmp.ne.s32.totalorder %s71, %s74
      %p80 = scmp.eq.s32.totalorder %s21, 0
      %p81 = por %p79, %p80
      %p82 = scmp.ne.s32.totalorder %s71, %s74
      %p83 = scmp.eq.s32.totalorder %s26, 1
      %p84 = por %p82, %p83
      %p85 = scmp.ne.s32.totalorder %s74, %s75
      %p86 = scmp.eq.s32.totalorder %s26, 0
      %p87 = por %p85, %p86
      %p88 = scmp.ne.s32.totalorder %s74, %s75
      %p89 = scmp.eq.s32.totalorder %s27, 1
      %p90 = por %p88, %p89
      %p92 = scmp.ne.s32.totalorder %s75, %s91
      %p93 = scmp.eq.s32.totalorder %s27, 0
      %p94 = por %p92, %p93
      %s95 = ssub.s32 %s28, %s40
      %p96 = scmp.eq.s32.totalorder %s95, 0
      %s98 = sadd.s32 %s97, 1
      %s99 = scalar_select %p96, %s97, %s98
      %p102 = pneg %p96
      %p103 = scmp.eq.s32.totalorder %s21, 1
      %p104 = por %p102, %p103
      %p105 = scmp.ne.s32.totalorder %s97, %s100
      %p106 = scmp.eq.s32.totalorder %s21, 0
      %p107 = por %p105, %p106
      %p108 = scmp.ne.s32.totalorder %s97, %s100
      %p109 = scmp.eq.s32.totalorder %s26, 1
      %p110 = por %p108, %p109
      %p111 = scmp.ne.s32.totalorder %s100, %s101
      %p112 = scmp.eq.s32.totalorder %s26, 0
      %p113 = por %p111, %p112
      %p114 = scmp.ne.s32.totalorder %s100, %s101
      %p115 = scmp.eq.s32.totalorder %s27, 1
      %p116 = por %p114, %p115
      %p118 = scmp.ne.s32.totalorder %s101, %s117
      %p119 = scmp.eq.s32.totalorder %s27, 0
      %p120 = por %p118, %p119
      %s121 = ssub.s32 %s28, %s40
      %p122 = scmp.eq.s32.totalorder %s121, 0
      %s124 = sadd.s32 %s123, 1
      %s125 = scalar_select %p122, %s123, %s124
      %p128 = pneg %p122
      %p129 = scmp.eq.s32.totalorder %s21, 1
      %p130 = por %p128, %p129
      %p131 = scmp.ne.s32.totalorder %s123, %s126
      %p132 = scmp.eq.s32.totalorder %s21, 0
      %p133 = por %p131, %p132
      %p134 = scmp.ne.s32.totalorder %s123, %s126
      %p135 = scmp.eq.s32.totalorder %s26, 1
      %p136 = por %p134, %p135
      %p137 = scmp.ne.s32.totalorder %s126, %s127
      %p138 = scmp.eq.s32.totalorder %s26, 0
      %p139 = por %p137, %p138
      %p140 = scmp.ne.s32.totalorder %s126, %s127
      %p141 = scmp.eq.s32.totalorder %s27, 1
      %p142 = por %p140, %p141
      %p144 = scmp.ne.s32.totalorder %s127, %s143
      %p145 = scmp.eq.s32.totalorder %s27, 0
      %p146 = por %p144, %p145
      %s147 = ssub.s32 %s28, %s40
      %p148 = scmp.eq.s32.totalorder %s147, 0
      %s150 = sadd.s32 %s149, 1
      %s151 = scalar_select %p148, %s149, %s150
      %p154 = pneg %p148
      %p155 = scmp.eq.s32.totalorder %s21, 1
      %p156 = por %p154, %p155
      %p157 = scmp.ne.s32.totalorder %s149, %s152
      %p158 = scmp.eq.s32.totalorder %s21, 0
      %p159 = por %p157, %p158
      %p160 = scmp.ne.s32.totalorder %s149, %s152
      %p161 = scmp.eq.s32.totalorder %s26, 1
      %p162 = por %p160, %p161
      %p163 = scmp.ne.s32.totalorder %s152, %s153
      %p164 = scmp.eq.s32.totalorder %s26, 0
      %p165 = por %p163, %p164
      %p166 = scmp.ne.s32.totalorder %s152, %s153
      %p167 = scmp.eq.s32.totalorder %s27, 1
      %p168 = por %p166, %p167
      %p170 = scmp.ne.s32.totalorder %s153, %s169
      %p171 = scmp.eq.s32.totalorder %s27, 0
      %p172 = por %p170, %p171
      %p173 = scmp.le.s32.totalorder 1, %s21
      %p174 = scmp.lt.s32.totalorder %s21, 3
      %p175 = pnand %p173, %p174
      %p176 = pneg %p175
      // Predicated region
      $region9: #{tpu_custom_call.1} parent=5 // pred_check
        _
      $region10: #{tpu_custom_call.1} parent=5 // pred_check_branch
        %178 = sbr.rel (%p175) target = $region12
      $region11: #{tpu_custom_call.1} parent=5 // pred_region
        %s179 = ssub.s32 %s21, 1
        // Predicated region
        $region13: #{tpu_custom_call.1} parent=11 // pred_check
          %p180 = pneg %p87
        $region14: #{tpu_custom_call.1} parent=11 // pred_check_branch
          %182 = sbr.rel (%p180) target = $region16
        $region15: #{tpu_custom_call.1} parent=11 // pred_region
          %s183 = smul.u32 64, %s31
          %185 = vsyncadd [#allocation7], 0
          %s186 = smul.addr %s183, 4
          %s187 = scalar_lea.hbm %s1, %s186
          %s188 = sshll.u32 %s187, 4
          %s189 = int_to_ptr.hbm [resolvable:$true] %s188
          %s190 = sshll.u32 [#allocation6], 4
          %s191 = int_to_ptr.vmem [resolvable:$true] %s190
          %196 = dma.hbm_to_vmem [thread:$0]  %s189, 4096, %s191, [#allocation7], 64, 64, 4
        $region16: #{tpu_custom_call.1} parent=11 // pred_fallthru
          _
      $region12: #{tpu_custom_call.1} parent=5 // pred_fallthru
        _
      %p197 = scmp.lt.s32.totalorder %s21, 2
      // Predicated region
      $region17: #{tpu_custom_call.1} parent=5 // pred_check
        %p198 = pneg %p197
      $region18: #{tpu_custom_call.1} parent=5 // pred_check_branch
        %200 = sbr.rel (%p198) target = $region20
      $region19: #{tpu_custom_call.1} parent=5 // pred_region
        // Predicated region
        $region21: #{tpu_custom_call.1} parent=19 // pred_check
          %p201 = pneg %p55
        $region22: #{tpu_custom_call.1} parent=19 // pred_check_branch
          %203 = sbr.rel (%p201) target = $region24
        $region23: #{tpu_custom_call.1} parent=19 // pred_region
          %s204 = sand.u32 %s45, 1
          %s205 = scalar_lea.sflag [#allocation4], %s204
          %s206 = sand.u32 %s45, 1
          %s207 = smul.addr %s206, 512
          %s208 = scalar_lea.vmem [#allocation3], %s207
          %s209 = smul.u32 32, %s28
          %s210 = smul.u32 4, %s29
          %212 = vsyncadd %s205, 0
          %s213 = smul.addr %s209, 4
          %s214 = sadd.s32 %s210, %s213
          %s215 = smul.addr %s214, 4
          %s216 = scalar_lea.hbm %s0, %s215
          %s217 = sshll.u32 %s216, 4
          %s218 = int_to_ptr.hbm [resolvable:$true] %s217
          %s219 = sshll.u32 %s208, 4
          %s220 = int_to_ptr.vmem [resolvable:$true] %s219
          %225 = dma.hbm_to_vmem [thread:$0]  %s218, 8192, %s220, %s205, 256, 256, 16
        $region24: #{tpu_custom_call.1} parent=19 // pred_fallthru
          _
      $region20: #{tpu_custom_call.1} parent=5 // pred_fallthru
        _
      %p226 = scmp.le.s32.totalorder 1, %s21
      %p227 = scmp.lt.s32.totalorder %s21, 3
      %p228 = pnand %p226, %p227
      %p229 = pneg %p228
      // Predicated region
      $region25: #{tpu_custom_call.1} parent=5 // pred_check
        _
      $region26: #{tpu_custom_call.1} parent=5 // pred_check_branch
        %231 = sbr.rel (%p228) target = $region28
      $region27: #{tpu_custom_call.1} parent=5 // pred_region
        %s232 = ssub.s32 %s21, 1
        %s233 = sand.u32 %s48, 1
        %s234 = scalar_lea.sflag [#allocation4], %s233
        %s235 = sand.u32 %s48, 1
        %s236 = smul.addr %s235, 512
        %s237 = scalar_lea.vmem [#allocation3], %s236
        // Predicated region
        $region29: #{tpu_custom_call.1} parent=27 // pred_check
          %p238 = pneg %p61
        $region30: #{tpu_custom_call.1} parent=27 // pred_check_branch
          %240 = sbr.rel (%p238) target = $region32
        $region31: #{tpu_custom_call.1} parent=27 // pred_region
          %242 = dma.done %s234, 8192
        $region32: #{tpu_custom_call.1} parent=27 // pred_fallthru
          _
        // Predicated region
        $region33: #{tpu_custom_call.1} parent=27 // pred_check
          %p243 = pneg %p87
        $region34: #{tpu_custom_call.1} parent=27 // pred_check_branch
          %245 = sbr.rel (%p243) target = $region36
        $region35: #{tpu_custom_call.1} parent=27 // pred_region
          %247 = dma.done [#allocation7], 4096
        $region36: #{tpu_custom_call.1} parent=27 // pred_fallthru
          _
        %s248 = sand.u32 %s48, 1
        %s249 = scalar_lea.sflag [#allocation4], %s248
        %s250 = sand.u32 %s48, 1
        %s251 = smul.addr %s250, 512
        %s252 = scalar_lea.vmem [#allocation3], %s251
        %p253 = pneg %p61
        %p254 = pneg %p58
        %p255 = pneg %p87
        %p256 = pneg %p84
        %p257 = pneg %p113
        %p258 = pneg %p110
        %s259 = sand.u32 %s100, 1
        %s260 = scalar_lea.sflag [#allocation5], %s259
        %s261 = sand.u32 %s100, 1
        %s262 = smul.addr %s261, 128
        %s263 = scalar_lea.vmem [#allocation8], %s262
        %p264 = pneg %p139
        %p265 = pneg %p136
        %s266 = sand.u32 %s26, 1
        %s267 = scalar_lea.sflag [#allocation10], %s266
        %s268 = sand.u32 %s126, 1
        %s269 = scalar_lea.vmem [#allocation9], %s268
        %p270 = pneg %p165
        %p271 = pneg %p162
        %s272 = sand.u32 %s26, 1
        %s273 = scalar_lea.sflag [#allocation10], %s272
        %s274 = sand.u32 %s152, 1
        %s275 = scalar_lea.vmem [#allocation11], %s274
        %s276 = smul.u32 32, %s30
        %s277 = smul.u32 4, %s31
        %s278 = smul.u32 64, %s31
        %s279 = smul.u32 32, %s30
        %p280 = scmp.eq.s32.totalorder %s31, 0
        // Predicated region
        $region37: #{tpu_custom_call.1} parent=27 // pred_check
          %p281 = pneg %p280
        $region38: #{tpu_custom_call.1} parent=27 // pred_check_branch
          %283 = sbr.rel (%p281) target = $region40
        $region39: #{tpu_custom_call.1} parent=27 // pred_region
          %284 = vst [vmem:[#allocation2] sm:$0xff] 0.0
          %285 = vst [vmem:[#allocation2 + $0x8] sm:$0xff] 0.0
          %286 = vst [vmem:[#allocation2 + $0x10] sm:$0xff] 0.0
          %287 = vst [vmem:[#allocation2 + $0x18] sm:$0xff] 0.0
          %288 = vst [vmem:[#allocation2 + $0x20] sm:$0xff] 0.0
          %289 = vst [vmem:[#allocation2 + $0x28] sm:$0xff] 0.0
          %290 = vst [vmem:[#allocation2 + $0x30] sm:$0xff] 0.0
          %291 = vst [vmem:[#allocation2 + $0x38] sm:$0xff] 0.0
          %292 = vst [vmem:[#allocation2 + $0x40] sm:$0xff] 0.0
          %293 = vst [vmem:[#allocation2 + $0x48] sm:$0xff] 0.0
          %294 = vst [vmem:[#allocation2 + $0x50] sm:$0xff] 0.0
          %295 = vst [vmem:[#allocation2 + $0x58] sm:$0xff] 0.0
          %296 = vst [vmem:[#allocation2 + $0x60] sm:$0xff] 0.0
          %297 = vst [vmem:[#allocation2 + $0x68] sm:$0xff] 0.0
          %298 = vst [vmem:[#allocation2 + $0x70] sm:$0xff] 0.0
          %299 = vst [vmem:[#allocation2 + $0x78] sm:$0xff] 0.0
          %300 = vst [vmem:[#allocation2 + $0x80] sm:$0xff] 0.0
          %301 = vst [vmem:[#allocation2 + $0x88] sm:$0xff] 0.0
          %302 = vst [vmem:[#allocation2 + $0x90] sm:$0xff] 0.0
          %303 = vst [vmem:[#allocation2 + $0x98] sm:$0xff] 0.0
          %304 = vst [vmem:[#allocation2 + $0xa0] sm:$0xff] 0.0
          %305 = vst [vmem:[#allocation2 + $0xa8] sm:$0xff] 0.0
          %306 = vst [vmem:[#allocation2 + $0xb0] sm:$0xff] 0.0
          %307 = vst [vmem:[#allocation2 + $0xb8] sm:$0xff] 0.0
          %308 = vst [vmem:[#allocation2 + $0xc0] sm:$0xff] 0.0
          %309 = vst [vmem:[#allocation2 + $0xc8] sm:$0xff] 0.0
          %310 = vst [vmem:[#allocation2 + $0xd0] sm:$0xff] 0.0
          %311 = vst [vmem:[#allocation2 + $0xd8] sm:$0xff] 0.0
          %312 = vst [vmem:[#allocation2 + $0xe0] sm:$0xff] 0.0
          %313 = vst [vmem:[#allocation2 + $0xe8] sm:$0xff] 0.0
          %314 = vst [vmem:[#allocation2 + $0xf0] sm:$0xff] 0.0
          %315 = vst [vmem:[#allocation2 + $0xf8] sm:$0xff] 0.0
        $region40: #{tpu_custom_call.1} parent=27 // pred_fallthru
          _
        %v316 = vld [vmem:[#allocation2] sm:$0xff]
        %v317 = vld [vmem:[#allocation2 + $0x8] sm:$0xff]
        %v318 = vld [vmem:[#allocation2 + $0x10] sm:$0xff]
        %v319 = vld [vmem:[#allocation2 + $0x18] sm:$0xff]
        %v320 = vld [vmem:[#allocation2 + $0x20] sm:$0xff]
        %v321 = vld [vmem:[#allocation2 + $0x28] sm:$0xff]
        %v322 = vld [vmem:[#allocation2 + $0x30] sm:$0xff]
        %v323 = vld [vmem:[#allocation2 + $0x38] sm:$0xff]
        %v324 = vld [vmem:[#allocation2 + $0x40] sm:$0xff]
        %v325 = vld [vmem:[#allocation2 + $0x48] sm:$0xff]
        %v326 = vld [vmem:[#allocation2 + $0x50] sm:$0xff]
        %v327 = vld [vmem:[#allocation2 + $0x58] sm:$0xff]
        %v328 = vld [vmem:[#allocation2 + $0x60] sm:$0xff]
        %v329 = vld [vmem:[#allocation2 + $0x68] sm:$0xff]
        %v330 = vld [vmem:[#allocation2 + $0x70] sm:$0xff]
        %v331 = vld [vmem:[#allocation2 + $0x78] sm:$0xff]
        %v332 = vld [vmem:[#allocation2 + $0x80] sm:$0xff]
        %v333 = vld [vmem:[#allocation2 + $0x88] sm:$0xff]
        %v334 = vld [vmem:[#allocation2 + $0x90] sm:$0xff]
        %v335 = vld [vmem:[#allocation2 + $0x98] sm:$0xff]
        %v336 = vld [vmem:[#allocation2 + $0xa0] sm:$0xff]
        %v337 = vld [vmem:[#allocation2 + $0xa8] sm:$0xff]
        %v338 = vld [vmem:[#allocation2 + $0xb0] sm:$0xff]
        %v339 = vld [vmem:[#allocation2 + $0xb8] sm:$0xff]
        %v340 = vld [vmem:[#allocation2 + $0xc0] sm:$0xff]
        %v341 = vld [vmem:[#allocation2 + $0xc8] sm:$0xff]
        %v342 = vld [vmem:[#allocation2 + $0xd0] sm:$0xff]
        %v343 = vld [vmem:[#allocation2 + $0xd8] sm:$0xff]
        %v344 = vld [vmem:[#allocation2 + $0xe0] sm:$0xff]
        %v345 = vld [vmem:[#allocation2 + $0xe8] sm:$0xff]
        %v346 = vld [vmem:[#allocation2 + $0xf0] sm:$0xff]
        %v347 = vld [vmem:[#allocation2 + $0xf8] sm:$0xff]
        %v348 = vld [vmem:[%s237] sm:$0xff]
        %v349 = vld [vmem:[%s237 + $0x8] sm:$0xff]
        %v350 = vld [vmem:[%s237 + $0x10] sm:$0xff]
        %v351 = vld [vmem:[%s237 + $0x18] sm:$0xff]
        %v352 = vld [vmem:[%s237 + $0x20] sm:$0xff]
        %v353 = vld [vmem:[%s237 + $0x28] sm:$0xff]
        %v354 = vld [vmem:[%s237 + $0x30] sm:$0xff]
        %v355 = vld [vmem:[%s237 + $0x38] sm:$0xff]
        %v356 = vld [vmem:[%s237 + $0x40] sm:$0xff]
        %v357 = vld [vmem:[%s237 + $0x48] sm:$0xff]
        %v358 = vld [vmem:[%s237 + $0x50] sm:$0xff]
        %v359 = vld [vmem:[%s237 + $0x58] sm:$0xff]
        %v360 = vld [vmem:[%s237 + $0x60] sm:$0xff]
        %v361 = vld [vmem:[%s237 + $0x68] sm:$0xff]
        %v362 = vld [vmem:[%s237 + $0x70] sm:$0xff]
        %v363 = vld [vmem:[%s237 + $0x78] sm:$0xff]
        %v364 = vld [vmem:[%s237 + $0x80] sm:$0xff]
        %v365 = vld [vmem:[%s237 + $0x88] sm:$0xff]
        %v366 = vld [vmem:[%s237 + $0x90] sm:$0xff]
        %v367 = vld [vmem:[%s237 + $0x98] sm:$0xff]
        %v368 = vld [vmem:[%s237 + $0xa0] sm:$0xff]
        %v369 = vld [vmem:[%s237 + $0xa8] sm:$0xff]
        %v370 = vld [vmem:[%s237 + $0xb0] sm:$0xff]
        %v371 = vld [vmem:[%s237 + $0xb8] sm:$0xff]
        %v372 = vld [vmem:[%s237 + $0xc0] sm:$0xff]
        %v373 = vld [vmem:[%s237 + $0xc8] sm:$0xff]
        %v374 = vld [vmem:[%s237 + $0xd0] sm:$0xff]
        %v375 = vld [vmem:[%s237 + $0xd8] sm:$0xff]
        %v376 = vld [vmem:[%s237 + $0xe0] sm:$0xff]
        %v377 = vld [vmem:[%s237 + $0xe8] sm:$0xff]
        %v378 = vld [vmem:[%s237 + $0xf0] sm:$0xff]
        %v379 = vld [vmem:[%s237 + $0xf8] sm:$0xff]
        %v380 = vld [vmem:[%s237 + $0x100] sm:$0xff]
        %v381 = vld [vmem:[%s237 + $0x108] sm:$0xff]
        %v382 = vld [vmem:[%s237 + $0x110] sm:$0xff]
        %v383 = vld [vmem:[%s237 + $0x118] sm:$0xff]
        %v384 = vld [vmem:[%s237 + $0x120] sm:$0xff]
        %v385 = vld [vmem:[%s237 + $0x128] sm:$0xff]
        %v386 = vld [vmem:[%s237 + $0x130] sm:$0xff]
        %v387 = vld [vmem:[%s237 + $0x138] sm:$0xff]
        %v388 = vld [vmem:[%s237 + $0x140] sm:$0xff]
        %v389 = vld [vmem:[%s237 + $0x148] sm:$0xff]
        %v390 = vld [vmem:[%s237 + $0x150] sm:$0xff]
        %v391 = vld [vmem:[%s237 + $0x158] sm:$0xff]
        %v392 = vld [vmem:[%s237 + $0x160] sm:$0xff]
        %v393 = vld [vmem:[%s237 + $0x168] sm:$0xff]
        %v394 = vld [vmem:[%s237 + $0x170] sm:$0xff]
        %v395 = vld [vmem:[%s237 + $0x178] sm:$0xff]
        %v396 = vld [vmem:[%s237 + $0x180] sm:$0xff]
        %v397 = vld [vmem:[%s237 + $0x188] sm:$0xff]
        %v398 = vld [vmem:[%s237 + $0x190] sm:$0xff]
        %v399 = vld [vmem:[%s237 + $0x198] sm:$0xff]
        %v400 = vld [vmem:[%s237 + $0x1a0] sm:$0xff]
        %v401 = vld [vmem:[%s237 + $0x1a8] sm:$0xff]
        %v402 = vld [vmem:[%s237 + $0x1b0] sm:$0xff]
        %v403 = vld [vmem:[%s237 + $0x1b8] sm:$0xff]
        %v404 = vld [vmem:[%s237 + $0x1c0] sm:$0xff]
        %v405 = vld [vmem:[%s237 + $0x1c8] sm:$0xff]
        %v406 = vld [vmem:[%s237 + $0x1d0] sm:$0xff]
        %v407 = vld [vmem:[%s237 + $0x1d8] sm:$0xff]
        %v408 = vld [vmem:[%s237 + $0x1e0] sm:$0xff]
        %v409 = vld [vmem:[%s237 + $0x1e8] sm:$0xff]
        %v410 = vld [vmem:[%s237 + $0x1f0] sm:$0xff]
        %v411 = vld [vmem:[%s237 + $0x1f8] sm:$0xff]
        %v412 = vld [vmem:[#allocation6] sm:$0xf]
        %v413 = vld [vmem:[#allocation6 + $0x4] sm:$0xf]
        %v414 = vld [vmem:[#allocation6 + $0x8] sm:$0xf]
        %v415 = vld [vmem:[#allocation6 + $0xc] sm:$0xf]
        %v416 = vld [vmem:[#allocation6 + $0x10] sm:$0xf]
        %v417 = vld [vmem:[#allocation6 + $0x14] sm:$0xf]
        %v418 = vld [vmem:[#allocation6 + $0x18] sm:$0xf]
        %v419 = vld [vmem:[#allocation6 + $0x1c] sm:$0xf]
        %v420 = vld [vmem:[#allocation6 + $0x20] sm:$0xf]
        %v421 = vld [vmem:[#allocation6 + $0x24] sm:$0xf]
        %v422 = vld [vmem:[#allocation6 + $0x28] sm:$0xf]
        %v423 = vld [vmem:[#allocation6 + $0x2c] sm:$0xf]
        %v424 = vld [vmem:[#allocation6 + $0x30] sm:$0xf]
        %v425 = vld [vmem:[#allocation6 + $0x34] sm:$0xf]
        %v426 = vld [vmem:[#allocation6 + $0x38] sm:$0xf]
        %v427 = vld [vmem:[#allocation6 + $0x3c] sm:$0xf]
        %v428 = vld [vmem:[#allocation6 + $0x40] sm:$0xf]
        %v429 = vld [vmem:[#allocation6 + $0x44] sm:$0xf]
        %v430 = vld [vmem:[#allocation6 + $0x48] sm:$0xf]
        %v431 = vld [vmem:[#allocation6 + $0x4c] sm:$0xf]
        %v432 = vld [vmem:[#allocation6 + $0x50] sm:$0xf]
        %v433 = vld [vmem:[#allocation6 + $0x54] sm:$0xf]
        %v434 = vld [vmem:[#allocation6 + $0x58] sm:$0xf]
        %v435 = vld [vmem:[#allocation6 + $0x5c] sm:$0xf]
        %v436 = vld [vmem:[#allocation6 + $0x60] sm:$0xf]
        %v437 = vld [vmem:[#allocation6 + $0x64] sm:$0xf]
        %v438 = vld [vmem:[#allocation6 + $0x68] sm:$0xf]
        %v439 = vld [vmem:[#allocation6 + $0x6c] sm:$0xf]
        %v440 = vld [vmem:[#allocation6 + $0x70] sm:$0xf]
        %v441 = vld [vmem:[#allocation6 + $0x74] sm:$0xf]
        %v442 = vld [vmem:[#allocation6 + $0x78] sm:$0xf]
        %v443 = vld [vmem:[#allocation6 + $0x7c] sm:$0xf]
        %v444 = vld [vmem:[#allocation6 + $0x80] sm:$0xf]
        %v445 = vld [vmem:[#allocation6 + $0x84] sm:$0xf]
        %v446 = vld [vmem:[#allocation6 + $0x88] sm:$0xf]
        %v447 = vld [vmem:[#allocation6 + $0x8c] sm:$0xf]
        %v448 = vld [vmem:[#allocation6 + $0x90] sm:$0xf]
        %v449 = vld [vmem:[#allocation6 + $0x94] sm:$0xf]
        %v450 = vld [vmem:[#allocation6 + $0x98] sm:$0xf]
        %v451 = vld [vmem:[#allocation6 + $0x9c] sm:$0xf]
        %v452 = vld [vmem:[#allocation6 + $0xa0] sm:$0xf]
        %v453 = vld [vmem:[#allocation6 + $0xa4] sm:$0xf]
        %v454 = vld [vmem:[#allocation6 + $0xa8] sm:$0xf]
        %v455 = vld [vmem:[#allocation6 + $0xac] sm:$0xf]
        %v456 = vld [vmem:[#allocation6 + $0xb0] sm:$0xf]
        %v457 = vld [vmem:[#allocation6 + $0xb4] sm:$0xf]
        %v458 = vld [vmem:[#allocation6 + $0xb8] sm:$0xf]
        %v459 = vld [vmem:[#allocation6 + $0xbc] sm:$0xf]
        %v460 = vld [vmem:[#allocation6 + $0xc0] sm:$0xf]
        %v461 = vld [vmem:[#allocation6 + $0xc4] sm:$0xf]
        %v462 = vld [vmem:[#allocation6 + $0xc8] sm:$0xf]
        %v463 = vld [vmem:[#allocation6 + $0xcc] sm:$0xf]
        %v464 = vld [vmem:[#allocation6 + $0xd0] sm:$0xf]
        %v465 = vld [vmem:[#allocation6 + $0xd4] sm:$0xf]
        %v466 = vld [vmem:[#allocation6 + $0xd8] sm:$0xf]
        %v467 = vld [vmem:[#allocation6 + $0xdc] sm:$0xf]
        %v468 = vld [vmem:[#allocation6 + $0xe0] sm:$0xf]
        %v469 = vld [vmem:[#allocation6 + $0xe4] sm:$0xf]
        %v470 = vld [vmem:[#allocation6 + $0xe8] sm:$0xf]
        %v471 = vld [vmem:[#allocation6 + $0xec] sm:$0xf]
        %v472 = vld [vmem:[#allocation6 + $0xf0] sm:$0xf]
        %v473 = vld [vmem:[#allocation6 + $0xf4] sm:$0xf]
        %v474 = vld [vmem:[#allocation6 + $0xf8] sm:$0xf]
        %v475 = vld [vmem:[#allocation6 + $0xfc] sm:$0xf]
        %v540 = vunpack.c.l.b16 %v348
        %v541 = vunpack.c.h.b16 %v348
        %v542 = vunpack.c.l.b16 %v349
        %v543 = vunpack.c.h.b16 %v349
        %v544 = vunpack.c.l.b16 %v350
        %v545 = vunpack.c.h.b16 %v350
        %v546 = vunpack.c.l.b16 %v351
        %v547 = vunpack.c.h.b16 %v351
        %v548 = vunpack.c.l.b16 %v352
        %v549 = vunpack.c.h.b16 %v352
        %v550 = vunpack.c.l.b16 %v353
        %v551 = vunpack.c.h.b16 %v353
        %v552 = vunpack.c.l.b16 %v354
        %v553 = vunpack.c.h.b16 %v354
        %v554 = vunpack.c.l.b16 %v355
        %v555 = vunpack.c.h.b16 %v355
        %v556 = vunpack.c.l.b16 %v356
        %v557 = vunpack.c.h.b16 %v356
        %v558 = vunpack.c.l.b16 %v357
        %v559 = vunpack.c.h.b16 %v357
        %v560 = vunpack.c.l.b16 %v358
        %v561 = vunpack.c.h.b16 %v358
        %v562 = vunpack.c.l.b16 %v359
        %v563 = vunpack.c.h.b16 %v359
        %v564 = vunpack.c.l.b16 %v360
        %v565 = vunpack.c.h.b16 %v360
        %v566 = vunpack.c.l.b16 %v361
        %v567 = vunpack.c.h.b16 %v361
        %v568 = vunpack.c.l.b16 %v362
        %v569 = vunpack.c.h.b16 %v362
        %v570 = vunpack.c.l.b16 %v363
        %v571 = vunpack.c.h.b16 %v363
        %v572 = vunpack.c.l.b16 %v364
        %v573 = vunpack.c.h.b16 %v364
        %v574 = vunpack.c.l.b16 %v365
        %v575 = vunpack.c.h.b16 %v365
        %v576 = vunpack.c.l.b16 %v366
        %v577 = vunpack.c.h.b16 %v366
        %v578 = vunpack.c.l.b16 %v367
        %v579 = vunpack.c.h.b16 %v367
        %v580 = vunpack.c.l.b16 %v368
        %v581 = vunpack.c.h.b16 %v368
        %v582 = vunpack.c.l.b16 %v369
        %v583 = vunpack.c.h.b16 %v369
        %v584 = vunpack.c.l.b16 %v370
        %v585 = vunpack.c.h.b16 %v370
        %v586 = vunpack.c.l.b16 %v371
        %v587 = vunpack.c.h.b16 %v371
        %v588 = vunpack.c.l.b16 %v372
        %v589 = vunpack.c.h.b16 %v372
        %v590 = vunpack.c.l.b16 %v373
        %v591 = vunpack.c.h.b16 %v373
        %v592 = vunpack.c.l.b16 %v374
        %v593 = vunpack.c.h.b16 %v374
        %v594 = vunpack.c.l.b16 %v375
        %v595 = vunpack.c.h.b16 %v375
        %v596 = vunpack.c.l.b16 %v376
        %v597 = vunpack.c.h.b16 %v376
        %v598 = vunpack.c.l.b16 %v377
        %v599 = vunpack.c.h.b16 %v377
        %v600 = vunpack.c.l.b16 %v378
        %v601 = vunpack.c.h.b16 %v378
        %v602 = vunpack.c.l.b16 %v379
        %v603 = vunpack.c.h.b16 %v379
        %v604 = vunpack.c.l.b16 %v380
        %v605 = vunpack.c.h.b16 %v380
        %v606 = vunpack.c.l.b16 %v381
        %v607 = vunpack.c.h.b16 %v381
        %v608 = vunpack.c.l.b16 %v382
        %v609 = vunpack.c.h.b16 %v382
        %v610 = vunpack.c.l.b16 %v383
        %v611 = vunpack.c.h.b16 %v383
        %v612 = vunpack.c.l.b16 %v384
        %v613 = vunpack.c.h.b16 %v384
        %v614 = vunpack.c.l.b16 %v385
        %v615 = vunpack.c.h.b16 %v385
        %v616 = vunpack.c.l.b16 %v386
        %v617 = vunpack.c.h.b16 %v386
        %v618 = vunpack.c.l.b16 %v387
        %v619 = vunpack.c.h.b16 %v387
        %v620 = vunpack.c.l.b16 %v388
        %v621 = vunpack.c.h.b16 %v388
        %v622 = vunpack.c.l.b16 %v389
        %v623 = vunpack.c.h.b16 %v389
        %v624 = vunpack.c.l.b16 %v390
        %v625 = vunpack.c.h.b16 %v390
        %v626 = vunpack.c.l.b16 %v391
        %v627 = vunpack.c.h.b16 %v391
        %v628 = vunpack.c.l.b16 %v392
        %v629 = vunpack.c.h.b16 %v392
        %v630 = vunpack.c.l.b16 %v393
        %v631 = vunpack.c.h.b16 %v393
        %v632 = vunpack.c.l.b16 %v394
        %v633 = vunpack.c.h.b16 %v394
        %v634 = vunpack.c.l.b16 %v395
        %v635 = vunpack.c.h.b16 %v395
        %v636 = vunpack.c.l.b16 %v396
        %v637 = vunpack.c.h.b16 %v396
        %v638 = vunpack.c.l.b16 %v397
        %v639 = vunpack.c.h.b16 %v397
        %v640 = vunpack.c.l.b16 %v398
        %v641 = vunpack.c.h.b16 %v398
        %v642 = vunpack.c.l.b16 %v399
        %v643 = vunpack.c.h.b16 %v399
        %v644 = vunpack.c.l.b16 %v400
        %v645 = vunpack.c.h.b16 %v400
        %v646 = vunpack.c.l.b16 %v401
        %v647 = vunpack.c.h.b16 %v401
        %v648 = vunpack.c.l.b16 %v402
        %v649 = vunpack.c.h.b16 %v402
        %v650 = vunpack.c.l.b16 %v403
        %v651 = vunpack.c.h.b16 %v403
        %v652 = vunpack.c.l.b16 %v404
        %v653 = vunpack.c.h.b16 %v404
        %v654 = vunpack.c.l.b16 %v405
        %v655 = vunpack.c.h.b16 %v405
        %v656 = vunpack.c.l.b16 %v406
        %v657 = vunpack.c.h.b16 %v406
        %v658 = vunpack.c.l.b16 %v407
        %v659 = vunpack.c.h.b16 %v407
        %v660 = vunpack.c.l.b16 %v408
        %v661 = vunpack.c.h.b16 %v408
        %v662 = vunpack.c.l.b16 %v409
        %v663 = vunpack.c.h.b16 %v409
        %v664 = vunpack.c.l.b16 %v410
        %v665 = vunpack.c.h.b16 %v410
        %v666 = vunpack.c.l.b16 %v411
        %v667 = vunpack.c.h.b16 %v411
        %v668 = vpack.c.b16 %v544, %v540
        %v669 = vpack.c.b16 %v545, %v541
        %v670 = vpack.c.b16 %v546, %v542
        %v671 = vpack.c.b16 %v547, %v543
        %v672 = vpack.c.b16 %v552, %v548
        %v673 = vpack.c.b16 %v553, %v549
        %v674 = vpack.c.b16 %v554, %v550
        %v675 = vpack.c.b16 %v555, %v551
        %v676 = vpack.c.b16 %v560, %v556
        %v677 = vpack.c.b16 %v561, %v557
        %v678 = vpack.c.b16 %v562, %v558
        %v679 = vpack.c.b16 %v563, %v559
        %v680 = vpack.c.b16 %v568, %v564
        %v681 = vpack.c.b16 %v569, %v565
        %v682 = vpack.c.b16 %v570, %v566
        %v683 = vpack.c.b16 %v571, %v567
        %v684 = vpack.c.b16 %v576, %v572
        %v685 = vpack.c.b16 %v577, %v573
        %v686 = vpack.c.b16 %v578, %v574
        %v687 = vpack.c.b16 %v579, %v575
        %v688 = vpack.c.b16 %v584, %v580
        %v689 = vpack.c.b16 %v585, %v581
        %v690 = vpack.c.b16 %v586, %v582
        %v691 = vpack.c.b16 %v587, %v583
        %v692 = vpack.c.b16 %v592, %v588
        %v693 = vpack.c.b16 %v593, %v589
        %v694 = vpack.c.b16 %v594, %v590
        %v695 = vpack.c.b16 %v595, %v591
        %v696 = vpack.c.b16 %v600, %v596
        %v697 = vpack.c.b16 %v601, %v597
        %v698 = vpack.c.b16 %v602, %v598
        %v699 = vpack.c.b16 %v603, %v599
        %v700 = vpack.c.b16 %v608, %v604
        %v701 = vpack.c.b16 %v609, %v605
        %v702 = vpack.c.b16 %v610, %v606
        %v703 = vpack.c.b16 %v611, %v607
        %v704 = vpack.c.b16 %v616, %v612
        %v705 = vpack.c.b16 %v617, %v613
        %v706 = vpack.c.b16 %v618, %v614
        %v707 = vpack.c.b16 %v619, %v615
        %v708 = vpack.c.b16 %v624, %v620
        %v709 = vpack.c.b16 %v625, %v621
        %v710 = vpack.c.b16 %v626, %v622
        %v711 = vpack.c.b16 %v627, %v623
        %v712 = vpack.c.b16 %v632, %v628
        %v713 = vpack.c.b16 %v633, %v629
        %v714 = vpack.c.b16 %v634, %v630
        %v715 = vpack.c.b16 %v635, %v631
        %v716 = vpack.c.b16 %v640, %v636
        %v717 = vpack.c.b16 %v641, %v637
        %v718 = vpack.c.b16 %v642, %v638
        %v719 = vpack.c.b16 %v643, %v639
        %v720 = vpack.c.b16 %v648, %v644
        %v721 = vpack.c.b16 %v649, %v645
        %v722 = vpack.c.b16 %v650, %v646
        %v723 = vpack.c.b16 %v651, %v647
        %v724 = vpack.c.b16 %v656, %v652
        %v725 = vpack.c.b16 %v657, %v653
        %v726 = vpack.c.b16 %v658, %v654
        %v727 = vpack.c.b16 %v659, %v655
        %v728 = vpack.c.b16 %v664, %v660
        %v729 = vpack.c.b16 %v665, %v661
        %v730 = vpack.c.b16 %v666, %v662
        %v731 = vpack.c.b16 %v667, %v663
        %v860 = vunpack.c.l.b16 %v412
        %v861 = vunpack.c.l.b16 %v413
        %v862 = vunpack.c.l.b16 %v414
        %v863 = vunpack.c.l.b16 %v415
        %v864 = vunpack.c.l.b16 %v416
        %v865 = vunpack.c.l.b16 %v417
        %v866 = vunpack.c.l.b16 %v418
        %v867 = vunpack.c.l.b16 %v419
        %v868 = vunpack.c.l.b16 %v420
        %v869 = vunpack.c.l.b16 %v421
        %v870 = vunpack.c.l.b16 %v422
        %v871 = vunpack.c.l.b16 %v423
        %v872 = vunpack.c.l.b16 %v424
        %v873 = vunpack.c.l.b16 %v425
        %v874 = vunpack.c.l.b16 %v426
        %v875 = vunpack.c.l.b16 %v427
        %v876 = vunpack.c.l.b16 %v428
        %v877 = vunpack.c.l.b16 %v429
        %v878 = vunpack.c.l.b16 %v430
        %v879 = vunpack.c.l.b16 %v431
        %v880 = vunpack.c.l.b16 %v432
        %v881 = vunpack.c.l.b16 %v433
        %v882 = vunpack.c.l.b16 %v434
        %v883 = vunpack.c.l.b16 %v435
        %v884 = vunpack.c.l.b16 %v436
        %v885 = vunpack.c.l.b16 %v437
        %v886 = vunpack.c.l.b16 %v438
        %v887 = vunpack.c.l.b16 %v439
        %v888 = vunpack.c.l.b16 %v440
        %v889 = vunpack.c.l.b16 %v441
        %v890 = vunpack.c.l.b16 %v442
        %v891 = vunpack.c.l.b16 %v443
        %v892 = vunpack.c.l.b16 %v444
        %v893 = vunpack.c.l.b16 %v445
        %v894 = vunpack.c.l.b16 %v446
        %v895 = vunpack.c.l.b16 %v447
        %v896 = vunpack.c.l.b16 %v448
        %v897 = vunpack.c.l.b16 %v449
        %v898 = vunpack.c.l.b16 %v450
        %v899 = vunpack.c.l.b16 %v451
        %v900 = vunpack.c.l.b16 %v452
        %v901 = vunpack.c.l.b16 %v453
        %v902 = vunpack.c.l.b16 %v454
        %v903 = vunpack.c.l.b16 %v455
        %v904 = vunpack.c.l.b16 %v456
        %v905 = vunpack.c.l.b16 %v457
        %v906 = vunpack.c.l.b16 %v458
        %v907 = vunpack.c.l.b16 %v459
        %v908 = vunpack.c.l.b16 %v460
        %v909 = vunpack.c.l.b16 %v461
        %v910 = vunpack.c.l.b16 %v462
        %v911 = vunpack.c.l.b16 %v463
        %v912 = vunpack.c.l.b16 %v464
        %v913 = vunpack.c.l.b16 %v465
        %v914 = vunpack.c.l.b16 %v466
        %v915 = vunpack.c.l.b16 %v467
        %v916 = vunpack.c.l.b16 %v468
        %v917 = vunpack.c.l.b16 %v469
        %v918 = vunpack.c.l.b16 %v470
        %v919 = vunpack.c.l.b16 %v471
        %v920 = vunpack.c.l.b16 %v472
        %v921 = vunpack.c.l.b16 %v473
        %v922 = vunpack.c.l.b16 %v474
        %v923 = vunpack.c.l.b16 %v475
        %v924 = vpack.c.b16 %v861, %v860
        %v925 = vpack.c.b16 %v863, %v862
        %v926 = vpack.c.b16 %v865, %v864
        %v927 = vpack.c.b16 %v867, %v866
        %v928 = vpack.c.b16 %v869, %v868
        %v929 = vpack.c.b16 %v871, %v870
        %v930 = vpack.c.b16 %v873, %v872
        %v931 = vpack.c.b16 %v875, %v874
        %v932 = vpack.c.b16 %v877, %v876
        %v933 = vpack.c.b16 %v879, %v878
        %v934 = vpack.c.b16 %v881, %v880
        %v935 = vpack.c.b16 %v883, %v882
        %v936 = vpack.c.b16 %v885, %v884
        %v937 = vpack.c.b16 %v887, %v886
        %v938 = vpack.c.b16 %v889, %v888
        %v939 = vpack.c.b16 %v891, %v890
        %v940 = vpack.c.b16 %v893, %v892
        %v941 = vpack.c.b16 %v895, %v894
        %v942 = vpack.c.b16 %v897, %v896
        %v943 = vpack.c.b16 %v899, %v898
        %v944 = vpack.c.b16 %v901, %v900
        %v945 = vpack.c.b16 %v903, %v902
        %v946 = vpack.c.b16 %v905, %v904
        %v947 = vpack.c.b16 %v907, %v906
        %v948 = vpack.c.b16 %v909, %v908
        %v949 = vpack.c.b16 %v911, %v910
        %v950 = vpack.c.b16 %v913, %v912
        %v951 = vpack.c.b16 %v915, %v914
        %v952 = vpack.c.b16 %v917, %v916
        %v953 = vpack.c.b16 %v919, %v918
        %v954 = vpack.c.b16 %v921, %v920
        %v955 = vpack.c.b16 %v923, %v922
        %988 = vmatpush.bf16.msra.mxu0 %v931
        %989 = vmatpush.bf16.msra.mxu0 %v930
        %990 = vmatpush.bf16.msra.mxu0 %v929
        %991 = vmatpush.bf16.msra.mxu0 %v928
        %992 = vmatpush.bf16.msra.mxu0 %v927
        %993 = vmatpush.bf16.msra.mxu0 %v926
        %994 = vmatpush.bf16.msra.mxu0 %v925
        %995 = vmatpush.bf16.msra.mxu0 %v924
        %996 = vmatmul.bf16.gmra.mxu0 %v668
        %v997 = vpop.f32.mrf.mxu0
        %v998 = vadd.f32 0.0, %v997
        %v999 = vpop.f32.mrf.mxu0
        %v1000 = vadd.f32 0.0, %v999
        %1001 = vmatmul.bf16.gmra.mxu0 %v672
        %v1002 = vpop.f32.mrf.mxu0
        %v1003 = vadd.f32 0.0, %v1002
        %v1004 = vpop.f32.mrf.mxu0
        %v1005 = vadd.f32 0.0, %v1004
        %1006 = vmatmul.bf16.gmra.mxu0 %v676
        %v1007 = vpop.f32.mrf.mxu0
        %v1008 = vadd.f32 0.0, %v1007
        %v1009 = vpop.f32.mrf.mxu0
        %v1010 = vadd.f32 0.0, %v1009
        %1011 = vmatmul.bf16.gmra.mxu0 %v680
        %v1012 = vpop.f32.mrf.mxu0
        %v1013 = vadd.f32 0.0, %v1012
        %v1014 = vpop.f32.mrf.mxu0
        %v1015 = vadd.f32 0.0, %v1014
        %1016 = vmatmul.bf16.gmra.mxu0 %v684
        %v1017 = vpop.f32.mrf.mxu0
        %v1018 = vadd.f32 0.0, %v1017
        %v1019 = vpop.f32.mrf.mxu0
        %v1020 = vadd.f32 0.0, %v1019
        %1021 = vmatmul.bf16.gmra.mxu0 %v688
        %v1022 = vpop.f32.mrf.mxu0
        %v1023 = vadd.f32 0.0, %v1022
        %v1024 = vpop.f32.mrf.mxu0
        %v1025 = vadd.f32 0.0, %v1024
        %1026 = vmatmul.bf16.gmra.mxu0 %v692
        %v1027 = vpop.f32.mrf.mxu0
        %v1028 = vadd.f32 0.0, %v1027
        %v1029 = vpop.f32.mrf.mxu0
        %v1030 = vadd.f32 0.0, %v1029
        %1031 = vmatmul.bf16.gmra.mxu0 %v696
        %v1032 = vpop.f32.mrf.mxu0
        %v1033 = vadd.f32 0.0, %v1032
        %v1034 = vpop.f32.mrf.mxu0
        %v1035 = vadd.f32 0.0, %v1034
        %1036 = vmatmul.bf16.gmra.mxu0 %v700
        %v1037 = vpop.f32.mrf.mxu0
        %v1038 = vadd.f32 0.0, %v1037
        %v1039 = vpop.f32.mrf.mxu0
        %v1040 = vadd.f32 0.0, %v1039
        %1041 = vmatmul.bf16.gmra.mxu0 %v704
        %v1042 = vpop.f32.mrf.mxu0
        %v1043 = vadd.f32 0.0, %v1042
        %v1044 = vpop.f32.mrf.mxu0
        %v1045 = vadd.f32 0.0, %v1044
        %1046 = vmatmul.bf16.gmra.mxu0 %v708
        %v1047 = vpop.f32.mrf.mxu0
        %v1048 = vadd.f32 0.0, %v1047
        %v1049 = vpop.f32.mrf.mxu0
        %v1050 = vadd.f32 0.0, %v1049
        %1051 = vmatmul.bf16.gmra.mxu0 %v712
        %v1052 = vpop.f32.mrf.mxu0
        %v1053 = vadd.f32 0.0, %v1052
        %v1054 = vpop.f32.mrf.mxu0
        %v1055 = vadd.f32 0.0, %v1054
        %1056 = vmatmul.bf16.gmra.mxu0 %v716
        %v1057 = vpop.f32.mrf.mxu0
        %v1058 = vadd.f32 0.0, %v1057
        %v1059 = vpop.f32.mrf.mxu0
        %v1060 = vadd.f32 0.0, %v1059
        %1061 = vmatmul.bf16.gmra.mxu0 %v720
        %v1062 = vpop.f32.mrf.mxu0
        %v1063 = vadd.f32 0.0, %v1062
        %v1064 = vpop.f32.mrf.mxu0
        %v1065 = vadd.f32 0.0, %v1064
        %1066 = vmatmul.bf16.gmra.mxu0 %v724
        %v1067 = vpop.f32.mrf.mxu0
        %v1068 = vadd.f32 0.0, %v1067
        %v1069 = vpop.f32.mrf.mxu0
        %v1070 = vadd.f32 0.0, %v1069
        %1071 = vmatmul.bf16.gmra.mxu0 %v728
        %v1072 = vpop.f32.mrf.mxu0
        %v1073 = vadd.f32 0.0, %v1072
        %v1074 = vpop.f32.mrf.mxu0
        %v1075 = vadd.f32 0.0, %v1074
        %1076 = vdwg.mxu0
        %1077 = vmatpush.bf16.msra.mxu0 %v939
        %1078 = vmatpush.bf16.msra.mxu0 %v938
        %1079 = vmatpush.bf16.msra.mxu0 %v937
        %1080 = vmatpush.bf16.msra.mxu0 %v936
        %1081 = vmatpush.bf16.msra.mxu0 %v935
        %1082 = vmatpush.bf16.msra.mxu0 %v934
        %1083 = vmatpush.bf16.msra.mxu0 %v933
        %1084 = vmatpush.bf16.msra.mxu0 %v932
        %1085 = vmatmul.bf16.gmra.mxu0 %v669
        %v1086 = vpop.f32.mrf.mxu0
        %v1087 = vadd.f32 %v998, %v1086
        %v1088 = vpop.f32.mrf.mxu0
        %v1089 = vadd.f32 %v1000, %v1088
        %1090 = vmatmul.bf16.gmra.mxu0 %v673
        %v1091 = vpop.f32.mrf.mxu0
        %v1092 = vadd.f32 %v1003, %v1091
        %v1093 = vpop.f32.mrf.mxu0
        %v1094 = vadd.f32 %v1005, %v1093
        %1095 = vmatmul.bf16.gmra.mxu0 %v677
        %v1096 = vpop.f32.mrf.mxu0
        %v1097 = vadd.f32 %v1008, %v1096
        %v1098 = vpop.f32.mrf.mxu0
        %v1099 = vadd.f32 %v1010, %v1098
        %1100 = vmatmul.bf16.gmra.mxu0 %v681
        %v1101 = vpop.f32.mrf.mxu0
        %v1102 = vadd.f32 %v1013, %v1101
        %v1103 = vpop.f32.mrf.mxu0
        %v1104 = vadd.f32 %v1015, %v1103
        %1105 = vmatmul.bf16.gmra.mxu0 %v685
        %v1106 = vpop.f32.mrf.mxu0
        %v1107 = vadd.f32 %v1018, %v1106
        %v1108 = vpop.f32.mrf.mxu0
        %v1109 = vadd.f32 %v1020, %v1108
        %1110 = vmatmul.bf16.gmra.mxu0 %v689
        %v1111 = vpop.f32.mrf.mxu0
        %v1112 = vadd.f32 %v1023, %v1111
        %v1113 = vpop.f32.mrf.mxu0
        %v1114 = vadd.f32 %v1025, %v1113
        %1115 = vmatmul.bf16.gmra.mxu0 %v693
        %v1116 = vpop.f32.mrf.mxu0
        %v1117 = vadd.f32 %v1028, %v1116
        %v1118 = vpop.f32.mrf.mxu0
        %v1119 = vadd.f32 %v1030, %v1118
        %1120 = vmatmul.bf16.gmra.mxu0 %v697
        %v1121 = vpop.f32.mrf.mxu0
        %v1122 = vadd.f32 %v1033, %v1121
        %v1123 = vpop.f32.mrf.mxu0
        %v1124 = vadd.f32 %v1035, %v1123
        %1125 = vmatmul.bf16.gmra.mxu0 %v701
        %v1126 = vpop.f32.mrf.mxu0
        %v1127 = vadd.f32 %v1038, %v1126
        %v1128 = vpop.f32.mrf.mxu0
        %v1129 = vadd.f32 %v1040, %v1128
        %1130 = vmatmul.bf16.gmra.mxu0 %v705
        %v1131 = vpop.f32.mrf.mxu0
        %v1132 = vadd.f32 %v1043, %v1131
        %v1133 = vpop.f32.mrf.mxu0
        %v1134 = vadd.f32 %v1045, %v1133
        %1135 = vmatmul.bf16.gmra.mxu0 %v709
        %v1136 = vpop.f32.mrf.mxu0
        %v1137 = vadd.f32 %v1048, %v1136
        %v1138 = vpop.f32.mrf.mxu0
        %v1139 = vadd.f32 %v1050, %v1138
        %1140 = vmatmul.bf16.gmra.mxu0 %v713
        %v1141 = vpop.f32.mrf.mxu0
        %v1142 = vadd.f32 %v1053, %v1141
        %v1143 = vpop.f32.mrf.mxu0
        %v1144 = vadd.f32 %v1055, %v1143
        %1145 = vmatmul.bf16.gmra.mxu0 %v717
        %v1146 = vpop.f32.mrf.mxu0
        %v1147 = vadd.f32 %v1058, %v1146
        %v1148 = vpop.f32.mrf.mxu0
        %v1149 = vadd.f32 %v1060, %v1148
        %1150 = vmatmul.bf16.gmra.mxu0 %v721
        %v1151 = vpop.f32.mrf.mxu0
        %v1152 = vadd.f32 %v1063, %v1151
        %v1153 = vpop.f32.mrf.mxu0
        %v1154 = vadd.f32 %v1065, %v1153
        %1155 = vmatmul.bf16.gmra.mxu0 %v725
        %v1156 = vpop.f32.mrf.mxu0
        %v1157 = vadd.f32 %v1068, %v1156
        %v1158 = vpop.f32.mrf.mxu0
        %v1159 = vadd.f32 %v1070, %v1158
        %1160 = vmatmul.bf16.gmra.mxu0 %v729
        %v1161 = vpop.f32.mrf.mxu0
        %v1162 = vadd.f32 %v1073, %v1161
        %v1163 = vpop.f32.mrf.mxu0
        %v1164 = vadd.f32 %v1075, %v1163
        %1165 = vdwg.mxu0
        %1166 = vmatpush.bf16.msra.mxu0 %v947
        %1167 = vmatpush.bf16.msra.mxu0 %v946
        %1168 = vmatpush.bf16.msra.mxu0 %v945
        %1169 = vmatpush.bf16.msra.mxu0 %v944
        %1170 = vmatpush.bf16.msra.mxu0 %v943
        %1171 = vmatpush.bf16.msra.mxu0 %v942
        %1172 = vmatpush.bf16.msra.mxu0 %v941
        %1173 = vmatpush.bf16.msra.mxu0 %v940
        %1174 = vmatmul.bf16.gmra.mxu0 %v670
        %v1175 = vpop.f32.mrf.mxu0
        %v1176 = vadd.f32 %v1087, %v1175
        %v1177 = vpop.f32.mrf.mxu0
        %v1178 = vadd.f32 %v1089, %v1177
        %1179 = vmatmul.bf16.gmra.mxu0 %v674
        %v1180 = vpop.f32.mrf.mxu0
        %v1181 = vadd.f32 %v1092, %v1180
        %v1182 = vpop.f32.mrf.mxu0
        %v1183 = vadd.f32 %v1094, %v1182
        %1184 = vmatmul.bf16.gmra.mxu0 %v678
        %v1185 = vpop.f32.mrf.mxu0
        %v1186 = vadd.f32 %v1097, %v1185
        %v1187 = vpop.f32.mrf.mxu0
        %v1188 = vadd.f32 %v1099, %v1187
        %1189 = vmatmul.bf16.gmra.mxu0 %v682
        %v1190 = vpop.f32.mrf.mxu0
        %v1191 = vadd.f32 %v1102, %v1190
        %v1192 = vpop.f32.mrf.mxu0
        %v1193 = vadd.f32 %v1104, %v1192
        %1194 = vmatmul.bf16.gmra.mxu0 %v686
        %v1195 = vpop.f32.mrf.mxu0
        %v1196 = vadd.f32 %v1107, %v1195
        %v1197 = vpop.f32.mrf.mxu0
        %v1198 = vadd.f32 %v1109, %v1197
        %1199 = vmatmul.bf16.gmra.mxu0 %v690
        %v1200 = vpop.f32.mrf.mxu0
        %v1201 = vadd.f32 %v1112, %v1200
        %v1202 = vpop.f32.mrf.mxu0
        %v1203 = vadd.f32 %v1114, %v1202
        %1204 = vmatmul.bf16.gmra.mxu0 %v694
        %v1205 = vpop.f32.mrf.mxu0
        %v1206 = vadd.f32 %v1117, %v1205
        %v1207 = vpop.f32.mrf.mxu0
        %v1208 = vadd.f32 %v1119, %v1207
        %1209 = vmatmul.bf16.gmra.mxu0 %v698
        %v1210 = vpop.f32.mrf.mxu0
        %v1211 = vadd.f32 %v1122, %v1210
        %v1212 = vpop.f32.mrf.mxu0
        %v1213 = vadd.f32 %v1124, %v1212
        %1214 = vmatmul.bf16.gmra.mxu0 %v702
        %v1215 = vpop.f32.mrf.mxu0
        %v1216 = vadd.f32 %v1127, %v1215
        %v1217 = vpop.f32.mrf.mxu0
        %v1218 = vadd.f32 %v1129, %v1217
        %1219 = vmatmul.bf16.gmra.mxu0 %v706
        %v1220 = vpop.f32.mrf.mxu0
        %v1221 = vadd.f32 %v1132, %v1220
        %v1222 = vpop.f32.mrf.mxu0
        %v1223 = vadd.f32 %v1134, %v1222
        %1224 = vmatmul.bf16.gmra.mxu0 %v710
        %v1225 = vpop.f32.mrf.mxu0
        %v1226 = vadd.f32 %v1137, %v1225
        %v1227 = vpop.f32.mrf.mxu0
        %v1228 = vadd.f32 %v1139, %v1227
        %1229 = vmatmul.bf16.gmra.mxu0 %v714
        %v1230 = vpop.f32.mrf.mxu0
        %v1231 = vadd.f32 %v1142, %v1230
        %v1232 = vpop.f32.mrf.mxu0
        %v1233 = vadd.f32 %v1144, %v1232
        %1234 = vmatmul.bf16.gmra.mxu0 %v718
        %v1235 = vpop.f32.mrf.mxu0
        %v1236 = vadd.f32 %v1147, %v1235
        %v1237 = vpop.f32.mrf.mxu0
        %v1238 = vadd.f32 %v1149, %v1237
        %1239 = vmatmul.bf16.gmra.mxu0 %v722
        %v1240 = vpop.f32.mrf.mxu0
        %v1241 = vadd.f32 %v1152, %v1240
        %v1242 = vpop.f32.mrf.mxu0
        %v1243 = vadd.f32 %v1154, %v1242
        %1244 = vmatmul.bf16.gmra.mxu0 %v726
        %v1245 = vpop.f32.mrf.mxu0
        %v1246 = vadd.f32 %v1157, %v1245
        %v1247 = vpop.f32.mrf.mxu0
        %v1248 = vadd.f32 %v1159, %v1247
        %1249 = vmatmul.bf16.gmra.mxu0 %v730
        %v1250 = vpop.f32.mrf.mxu0
        %v1251 = vadd.f32 %v1162, %v1250
        %v1252 = vpop.f32.mrf.mxu0
        %v1253 = vadd.f32 %v1164, %v1252
        %1254 = vdwg.mxu0
        %1255 = vmatpush.bf16.msra.mxu0 %v955
        %1256 = vmatpush.bf16.msra.mxu0 %v954
        %1257 = vmatpush.bf16.msra.mxu0 %v953
        %1258 = vmatpush.bf16.msra.mxu0 %v952
        %1259 = vmatpush.bf16.msra.mxu0 %v951
        %1260 = vmatpush.bf16.msra.mxu0 %v950
        %1261 = vmatpush.bf16.msra.mxu0 %v949
        %1262 = vmatpush.bf16.msra.mxu0 %v948
        %1263 = vmatmul.bf16.gmra.mxu0 %v671
        %v1264 = vpop.f32.mrf.mxu0
        %v1265 = vadd.f32 %v1176, %v1264
        %v1266 = vpop.f32.mrf.mxu0
        %v1267 = vadd.f32 %v1178, %v1266
        %1268 = vmatmul.bf16.gmra.mxu0 %v675
        %v1269 = vpop.f32.mrf.mxu0
        %v1270 = vadd.f32 %v1181, %v1269
        %v1271 = vpop.f32.mrf.mxu0
        %v1272 = vadd.f32 %v1183, %v1271
        %1273 = vmatmul.bf16.gmra.mxu0 %v679
        %v1274 = vpop.f32.mrf.mxu0
        %v1275 = vadd.f32 %v1186, %v1274
        %v1276 = vpop.f32.mrf.mxu0
        %v1277 = vadd.f32 %v1188, %v1276
        %1278 = vmatmul.bf16.gmra.mxu0 %v683
        %v1279 = vpop.f32.mrf.mxu0
        %v1280 = vadd.f32 %v1191, %v1279
        %v1281 = vpop.f32.mrf.mxu0
        %v1282 = vadd.f32 %v1193, %v1281
        %1283 = vmatmul.bf16.gmra.mxu0 %v687
        %v1284 = vpop.f32.mrf.mxu0
        %v1285 = vadd.f32 %v1196, %v1284
        %v1286 = vpop.f32.mrf.mxu0
        %v1287 = vadd.f32 %v1198, %v1286
        %1288 = vmatmul.bf16.gmra.mxu0 %v691
        %v1289 = vpop.f32.mrf.mxu0
        %v1290 = vadd.f32 %v1201, %v1289
        %v1291 = vpop.f32.mrf.mxu0
        %v1292 = vadd.f32 %v1203, %v1291
        %1293 = vmatmul.bf16.gmra.mxu0 %v695
        %v1294 = vpop.f32.mrf.mxu0
        %v1295 = vadd.f32 %v1206, %v1294
        %v1296 = vpop.f32.mrf.mxu0
        %v1297 = vadd.f32 %v1208, %v1296
        %1298 = vmatmul.bf16.gmra.mxu0 %v699
        %v1299 = vpop.f32.mrf.mxu0
        %v1300 = vadd.f32 %v1211, %v1299
        %v1301 = vpop.f32.mrf.mxu0
        %v1302 = vadd.f32 %v1213, %v1301
        %1303 = vmatmul.bf16.gmra.mxu0 %v703
        %v1304 = vpop.f32.mrf.mxu0
        %v1305 = vadd.f32 %v1216, %v1304
        %v1306 = vpop.f32.mrf.mxu0
        %v1307 = vadd.f32 %v1218, %v1306
        %1308 = vmatmul.bf16.gmra.mxu0 %v707
        %v1309 = vpop.f32.mrf.mxu0
        %v1310 = vadd.f32 %v1221, %v1309
        %v1311 = vpop.f32.mrf.mxu0
        %v1312 = vadd.f32 %v1223, %v1311
        %1313 = vmatmul.bf16.gmra.mxu0 %v711
        %v1314 = vpop.f32.mrf.mxu0
        %v1315 = vadd.f32 %v1226, %v1314
        %v1316 = vpop.f32.mrf.mxu0
        %v1317 = vadd.f32 %v1228, %v1316
        %1318 = vmatmul.bf16.gmra.mxu0 %v715
        %v1319 = vpop.f32.mrf.mxu0
        %v1320 = vadd.f32 %v1231, %v1319
        %v1321 = vpop.f32.mrf.mxu0
        %v1322 = vadd.f32 %v1233, %v1321
        %1323 = vmatmul.bf16.gmra.mxu0 %v719
        %v1324 = vpop.f32.mrf.mxu0
        %v1325 = vadd.f32 %v1236, %v1324
        %v1326 = vpop.f32.mrf.mxu0
        %v1327 = vadd.f32 %v1238, %v1326
        %1328 = vmatmul.bf16.gmra.mxu0 %v723
        %v1329 = vpop.f32.mrf.mxu0
        %v1330 = vadd.f32 %v1241, %v1329
        %v1331 = vpop.f32.mrf.mxu0
        %v1332 = vadd.f32 %v1243, %v1331
        %1333 = vmatmul.bf16.gmra.mxu0 %v727
        %v1334 = vpop.f32.mrf.mxu0
        %v1335 = vadd.f32 %v1246, %v1334
        %v1336 = vpop.f32.mrf.mxu0
        %v1337 = vadd.f32 %v1248, %v1336
        %1338 = vmatmul.bf16.gmra.mxu0 %v731
        %v1339 = vpop.f32.mrf.mxu0
        %v1340 = vadd.f32 %v1251, %v1339
        %v1341 = vpop.f32.mrf.mxu0
        %v1342 = vadd.f32 %v1253, %v1341
        %1343 = vdwg.mxu0
        %v1344 = vadd.f32 %v316, %v1265
        %v1345 = vadd.f32 %v317, %v1267
        %v1346 = vadd.f32 %v318, %v1270
        %v1347 = vadd.f32 %v319, %v1272
        %v1348 = vadd.f32 %v320, %v1275
        %v1349 = vadd.f32 %v321, %v1277
        %v1350 = vadd.f32 %v322, %v1280
        %v1351 = vadd.f32 %v323, %v1282
        %v1352 = vadd.f32 %v324, %v1285
        %v1353 = vadd.f32 %v325, %v1287
        %v1354 = vadd.f32 %v326, %v1290
        %v1355 = vadd.f32 %v327, %v1292
        %v1356 = vadd.f32 %v328, %v1295
        %v1357 = vadd.f32 %v329, %v1297
        %v1358 = vadd.f32 %v330, %v1300
        %v1359 = vadd.f32 %v331, %v1302
        %v1360 = vadd.f32 %v332, %v1305
        %v1361 = vadd.f32 %v333, %v1307
        %v1362 = vadd.f32 %v334, %v1310
        %v1363 = vadd.f32 %v335, %v1312
        %v1364 = vadd.f32 %v336, %v1315
        %v1365 = vadd.f32 %v337, %v1317
        %v1366 = vadd.f32 %v338, %v1320
        %v1367 = vadd.f32 %v339, %v1322
        %v1368 = vadd.f32 %v340, %v1325
        %v1369 = vadd.f32 %v341, %v1327
        %v1370 = vadd.f32 %v342, %v1330
        %v1371 = vadd.f32 %v343, %v1332
        %v1372 = vadd.f32 %v344, %v1335
        %v1373 = vadd.f32 %v345, %v1337
        %v1374 = vadd.f32 %v346, %v1340
        %v1375 = vadd.f32 %v347, %v1342
        %1376 = vst [vmem:[#allocation2] sm:$0xff] %v1344
        %1377 = vst [vmem:[#allocation2 + $0x8] sm:$0xff] %v1345
        %1378 = vst [vmem:[#allocation2 + $0x10] sm:$0xff] %v1346
        %1379 = vst [vmem:[#allocation2 + $0x18] sm:$0xff] %v1347
        %1380 = vst [vmem:[#allocation2 + $0x20] sm:$0xff] %v1348
        %1381 = vst [vmem:[#allocation2 + $0x28] sm:$0xff] %v1349
        %1382 = vst [vmem:[#allocation2 + $0x30] sm:$0xff] %v1350
        %1383 = vst [vmem:[#allocation2 + $0x38] sm:$0xff] %v1351
        %1384 = vst [vmem:[#allocation2 + $0x40] sm:$0xff] %v1352
        %1385 = vst [vmem:[#allocation2 + $0x48] sm:$0xff] %v1353
        %1386 = vst [vmem:[#allocation2 + $0x50] sm:$0xff] %v1354
        %1387 = vst [vmem:[#allocation2 + $0x58] sm:$0xff] %v1355
        %1388 = vst [vmem:[#allocation2 + $0x60] sm:$0xff] %v1356
        %1389 = vst [vmem:[#allocation2 + $0x68] sm:$0xff] %v1357
        %1390 = vst [vmem:[#allocation2 + $0x70] sm:$0xff] %v1358
        %1391 = vst [vmem:[#allocation2 + $0x78] sm:$0xff] %v1359
        %1392 = vst [vmem:[#allocation2 + $0x80] sm:$0xff] %v1360
        %1393 = vst [vmem:[#allocation2 + $0x88] sm:$0xff] %v1361
        %1394 = vst [vmem:[#allocation2 + $0x90] sm:$0xff] %v1362
        %1395 = vst [vmem:[#allocation2 + $0x98] sm:$0xff] %v1363
        %1396 = vst [vmem:[#allocation2 + $0xa0] sm:$0xff] %v1364
        %1397 = vst [vmem:[#allocation2 + $0xa8] sm:$0xff] %v1365
        %1398 = vst [vmem:[#allocation2 + $0xb0] sm:$0xff] %v1366
        %1399 = vst [vmem:[#allocation2 + $0xb8] sm:$0xff] %v1367
        %1400 = vst [vmem:[#allocation2 + $0xc0] sm:$0xff] %v1368
        %1401 = vst [vmem:[#allocation2 + $0xc8] sm:$0xff] %v1369
        %1402 = vst [vmem:[#allocation2 + $0xd0] sm:$0xff] %v1370
        %1403 = vst [vmem:[#allocation2 + $0xd8] sm:$0xff] %v1371
        %1404 = vst [vmem:[#allocation2 + $0xe0] sm:$0xff] %v1372
        %1405 = vst [vmem:[#allocation2 + $0xe8] sm:$0xff] %v1373
        %1406 = vst [vmem:[#allocation2 + $0xf0] sm:$0xff] %v1374
        %1407 = vst [vmem:[#allocation2 + $0xf8] sm:$0xff] %v1375
        // Predicated region
        $region41: #{tpu_custom_call.1} parent=27 // pred_check
          %p1408 = pneg %p280
        $region42: #{tpu_custom_call.1} parent=27 // pred_check_branch
          %1410 = sbr.rel (%p1408) target = $region44
        $region43: #{tpu_custom_call.1} parent=27 // pred_region
          %v1411 = vld [vmem:[#allocation2] sm:$0xff]
          %v1412 = vld [vmem:[#allocation2 + $0x8] sm:$0xff]
          %v1413 = vld [vmem:[#allocation2 + $0x10] sm:$0xff]
          %v1414 = vld [vmem:[#allocation2 + $0x18] sm:$0xff]
          %v1415 = vld [vmem:[#allocation2 + $0x20] sm:$0xff]
          %v1416 = vld [vmem:[#allocation2 + $0x28] sm:$0xff]
          %v1417 = vld [vmem:[#allocation2 + $0x30] sm:$0xff]
          %v1418 = vld [vmem:[#allocation2 + $0x38] sm:$0xff]
          %v1419 = vld [vmem:[#allocation2 + $0x40] sm:$0xff]
          %v1420 = vld [vmem:[#allocation2 + $0x48] sm:$0xff]
          %v1421 = vld [vmem:[#allocation2 + $0x50] sm:$0xff]
          %v1422 = vld [vmem:[#allocation2 + $0x58] sm:$0xff]
          %v1423 = vld [vmem:[#allocation2 + $0x60] sm:$0xff]
          %v1424 = vld [vmem:[#allocation2 + $0x68] sm:$0xff]
          %v1425 = vld [vmem:[#allocation2 + $0x70] sm:$0xff]
          %v1426 = vld [vmem:[#allocation2 + $0x78] sm:$0xff]
          %v1427 = vld [vmem:[#allocation2 + $0x80] sm:$0xff]
          %v1428 = vld [vmem:[#allocation2 + $0x88] sm:$0xff]
          %v1429 = vld [vmem:[#allocation2 + $0x90] sm:$0xff]
          %v1430 = vld [vmem:[#allocation2 + $0x98] sm:$0xff]
          %v1431 = vld [vmem:[#allocation2 + $0xa0] sm:$0xff]
          %v1432 = vld [vmem:[#allocation2 + $0xa8] sm:$0xff]
          %v1433 = vld [vmem:[#allocation2 + $0xb0] sm:$0xff]
          %v1434 = vld [vmem:[#allocation2 + $0xb8] sm:$0xff]
          %v1435 = vld [vmem:[#allocation2 + $0xc0] sm:$0xff]
          %v1436 = vld [vmem:[#allocation2 + $0xc8] sm:$0xff]
          %v1437 = vld [vmem:[#allocation2 + $0xd0] sm:$0xff]
          %v1438 = vld [vmem:[#allocation2 + $0xd8] sm:$0xff]
          %v1439 = vld [vmem:[#allocation2 + $0xe0] sm:$0xff]
          %v1440 = vld [vmem:[#allocation2 + $0xe8] sm:$0xff]
          %v1441 = vld [vmem:[#allocation2 + $0xf0] sm:$0xff]
          %v1442 = vld [vmem:[#allocation2 + $0xf8] sm:$0xff]
          %v1443 = vpack.c.bf16 %v1411, %v1411
          %v1444 = vpack.c.bf16 %v1412, %v1412
          %v1445 = vpack.c.bf16 %v1413, %v1413
          %v1446 = vpack.c.bf16 %v1414, %v1414
          %v1447 = vpack.c.bf16 %v1415, %v1415
          %v1448 = vpack.c.bf16 %v1416, %v1416
          %v1449 = vpack.c.bf16 %v1417, %v1417
          %v1450 = vpack.c.bf16 %v1418, %v1418
          %v1451 = vpack.c.bf16 %v1419, %v1419
          %v1452 = vpack.c.bf16 %v1420, %v1420
          %v1453 = vpack.c.bf16 %v1421, %v1421
          %v1454 = vpack.c.bf16 %v1422, %v1422
          %v1455 = vpack.c.bf16 %v1423, %v1423
          %v1456 = vpack.c.bf16 %v1424, %v1424
          %v1457 = vpack.c.bf16 %v1425, %v1425
          %v1458 = vpack.c.bf16 %v1426, %v1426
          %v1459 = vpack.c.bf16 %v1427, %v1427
          %v1460 = vpack.c.bf16 %v1428, %v1428
          %v1461 = vpack.c.bf16 %v1429, %v1429
          %v1462 = vpack.c.bf16 %v1430, %v1430
          %v1463 = vpack.c.bf16 %v1431, %v1431
          %v1464 = vpack.c.bf16 %v1432, %v1432
          %v1465 = vpack.c.bf16 %v1433, %v1433
          %v1466 = vpack.c.bf16 %v1434, %v1434
          %v1467 = vpack.c.bf16 %v1435, %v1435
          %v1468 = vpack.c.bf16 %v1436, %v1436
          %v1469 = vpack.c.bf16 %v1437, %v1437
          %v1470 = vpack.c.bf16 %v1438, %v1438
          %v1471 = vpack.c.bf16 %v1439, %v1439
          %v1472 = vpack.c.bf16 %v1440, %v1440
          %v1473 = vpack.c.bf16 %v1441, %v1441
          %v1474 = vpack.c.bf16 %v1442, %v1442
          %1475 = vst [vmem:[%s263] sm:$0xf] %v1443
          %1476 = vst [vmem:[%s263 + $0x4] sm:$0xf] %v1444
          %1477 = vst [vmem:[%s263 + $0x8] sm:$0xf] %v1445
          %1478 = vst [vmem:[%s263 + $0xc] sm:$0xf] %v1446
          %1479 = vst [vmem:[%s263 + $0x10] sm:$0xf] %v1447
          %1480 = vst [vmem:[%s263 + $0x14] sm:$0xf] %v1448
          %1481 = vst [vmem:[%s263 + $0x18] sm:$0xf] %v1449
          %1482 = vst [vmem:[%s263 + $0x1c] sm:$0xf] %v1450
          %1483 = vst [vmem:[%s263 + $0x20] sm:$0xf] %v1451
          %1484 = vst [vmem:[%s263 + $0x24] sm:$0xf] %v1452
          %1485 = vst [vmem:[%s263 + $0x28] sm:$0xf] %v1453
          %1486 = vst [vmem:[%s263 + $0x2c] sm:$0xf] %v1454
          %1487 = vst [vmem:[%s263 + $0x30] sm:$0xf] %v1455
          %1488 = vst [vmem:[%s263 + $0x34] sm:$0xf] %v1456
          %1489 = vst [vmem:[%s263 + $0x38] sm:$0xf] %v1457
          %1490 = vst [vmem:[%s263 + $0x3c] sm:$0xf] %v1458
          %1491 = vst [vmem:[%s263 + $0x40] sm:$0xf] %v1459
          %1492 = vst [vmem:[%s263 + $0x44] sm:$0xf] %v1460
          %1493 = vst [vmem:[%s263 + $0x48] sm:$0xf] %v1461
          %1494 = vst [vmem:[%s263 + $0x4c] sm:$0xf] %v1462
          %1495 = vst [vmem:[%s263 + $0x50] sm:$0xf] %v1463
          %1496 = vst [vmem:[%s263 + $0x54] sm:$0xf] %v1464
          %1497 = vst [vmem:[%s263 + $0x58] sm:$0xf] %v1465
          %1498 = vst [vmem:[%s263 + $0x5c] sm:$0xf] %v1466
          %1499 = vst [vmem:[%s263 + $0x60] sm:$0xf] %v1467
          %1500 = vst [vmem:[%s263 + $0x64] sm:$0xf] %v1468
          %1501 = vst [vmem:[%s263 + $0x68] sm:$0xf] %v1469
          %1502 = vst [vmem:[%s263 + $0x6c] sm:$0xf] %v1470
          %1503 = vst [vmem:[%s263 + $0x70] sm:$0xf] %v1471
          %1504 = vst [vmem:[%s263 + $0x74] sm:$0xf] %v1472
          %1505 = vst [vmem:[%s263 + $0x78] sm:$0xf] %v1473
          %1506 = vst [vmem:[%s263 + $0x7c] sm:$0xf] %v1474
          %v1507 = vadd.f32 %v1411, %v1412
          %v1508 = vadd.f32 %v1507, %v1413
          %v1509 = vadd.f32 %v1508, %v1414
          %v1510 = vadd.f32 %v1509, %v1415
          %v1511 = vadd.f32 %v1510, %v1416
          %v1512 = vadd.f32 %v1511, %v1417
          %v1513 = vadd.f32 %v1512, %v1418
          %v1514 = vadd.f32 %v1513, %v1419
          %v1515 = vadd.f32 %v1514, %v1420
          %v1516 = vadd.f32 %v1515, %v1421
          %v1517 = vadd.f32 %v1516, %v1422
          %v1518 = vadd.f32 %v1517, %v1423
          %v1519 = vadd.f32 %v1518, %v1424
          %v1520 = vadd.f32 %v1519, %v1425
          %v1521 = vadd.f32 %v1520, %v1426
          %v1522 = vadd.f32 %v1521, %v1427
          %v1523 = vadd.f32 %v1522, %v1428
          %v1524 = vadd.f32 %v1523, %v1429
          %v1525 = vadd.f32 %v1524, %v1430
          %v1526 = vadd.f32 %v1525, %v1431
          %v1527 = vadd.f32 %v1526, %v1432
          %v1528 = vadd.f32 %v1527, %v1433
          %v1529 = vadd.f32 %v1528, %v1434
          %v1530 = vadd.f32 %v1529, %v1435
          %v1531 = vadd.f32 %v1530, %v1436
          %v1532 = vadd.f32 %v1531, %v1437
          %v1533 = vadd.f32 %v1532, %v1438
          %v1534 = vadd.f32 %v1533, %v1439
          %v1535 = vadd.f32 %v1534, %v1440
          %v1536 = vadd.f32 %v1535, %v1441
          %v1537 = vadd.f32 %v1536, %v1442
          %v1538 = vrot.slane %v1537, 4
          %v1539 = vadd.f32 %v1537, %v1538
          %v1540 = vrot.slane %v1539, 2
          %v1541 = vadd.f32 %v1539, %v1540
          %v1542 = vrot.slane %v1541, 1
          %v1543 = vadd.f32 %v1541, %v1542
          %v1544 = vmul.f32 %v1411, %v1411
          %v1545 = vmul.f32 %v1412, %v1412
          %v1546 = vmul.f32 %v1413, %v1413
          %v1547 = vmul.f32 %v1414, %v1414
          %v1548 = vmul.f32 %v1415, %v1415
          %v1549 = vmul.f32 %v1416, %v1416
          %v1550 = vmul.f32 %v1417, %v1417
          %v1551 = vmul.f32 %v1418, %v1418
          %v1552 = vmul.f32 %v1419, %v1419
          %v1553 = vmul.f32 %v1420, %v1420
          %v1554 = vmul.f32 %v1421, %v1421
          %v1555 = vmul.f32 %v1422, %v1422
          %v1556 = vmul.f32 %v1423, %v1423
          %v1557 = vmul.f32 %v1424, %v1424
          %v1558 = vmul.f32 %v1425, %v1425
          %v1559 = vmul.f32 %v1426, %v1426
          %v1560 = vmul.f32 %v1427, %v1427
          %v1561 = vmul.f32 %v1428, %v1428
          %v1562 = vmul.f32 %v1429, %v1429
          %v1563 = vmul.f32 %v1430, %v1430
          %v1564 = vmul.f32 %v1431, %v1431
          %v1565 = vmul.f32 %v1432, %v1432
          %v1566 = vmul.f32 %v1433, %v1433
          %v1567 = vmul.f32 %v1434, %v1434
          %v1568 = vmul.f32 %v1435, %v1435
          %v1569 = vmul.f32 %v1436, %v1436
          %v1570 = vmul.f32 %v1437, %v1437
          %v1571 = vmul.f32 %v1438, %v1438
          %v1572 = vmul.f32 %v1439, %v1439
          %v1573 = vmul.f32 %v1440, %v1440
          %v1574 = vmul.f32 %v1441, %v1441
          %v1575 = vmul.f32 %v1442, %v1442
          %v1576 = vadd.f32 %v1544, %v1545
          %v1577 = vadd.f32 %v1576, %v1546
          %v1578 = vadd.f32 %v1577, %v1547
          %v1579 = vadd.f32 %v1578, %v1548
          %v1580 = vadd.f32 %v1579, %v1549
          %v1581 = vadd.f32 %v1580, %v1550
          %v1582 = vadd.f32 %v1581, %v1551
          %v1583 = vadd.f32 %v1582, %v1552
          %v1584 = vadd.f32 %v1583, %v1553
          %v1585 = vadd.f32 %v1584, %v1554
          %v1586 = vadd.f32 %v1585, %v1555
          %v1587 = vadd.f32 %v1586, %v1556
          %v1588 = vadd.f32 %v1587, %v1557
          %v1589 = vadd.f32 %v1588, %v1558
          %v1590 = vadd.f32 %v1589, %v1559
          %v1591 = vadd.f32 %v1590, %v1560
          %v1592 = vadd.f32 %v1591, %v1561
          %v1593 = vadd.f32 %v1592, %v1562
          %v1594 = vadd.f32 %v1593, %v1563
          %v1595 = vadd.f32 %v1594, %v1564
          %v1596 = vadd.f32 %v1595, %v1565
          %v1597 = vadd.f32 %v1596, %v1566
          %v1598 = vadd.f32 %v1597, %v1567
          %v1599 = vadd.f32 %v1598, %v1568
          %v1600 = vadd.f32 %v1599, %v1569
          %v1601 = vadd.f32 %v1600, %v1570
          %v1602 = vadd.f32 %v1601, %v1571
          %v1603 = vadd.f32 %v1602, %v1572
          %v1604 = vadd.f32 %v1603, %v1573
          %v1605 = vadd.f32 %v1604, %v1574
          %v1606 = vadd.f32 %v1605, %v1575
          %v1607 = vrot.slane %v1606, 4
          %v1608 = vadd.f32 %v1606, %v1607
          %v1609 = vrot.slane %v1608, 2
          %v1610 = vadd.f32 %v1608, %v1609
          %v1611 = vrot.slane %v1610, 1
          %v1612 = vadd.f32 %v1610, %v1611
          %1613 = vst [vmem:[%s269] sm:$0x1] %v1543
          %1614 = vst [vmem:[%s275] sm:$0x1] %v1612
        $region44: #{tpu_custom_call.1} parent=27 // pred_fallthru
          _
        %s1615 = sand.u32 %s100, 1
        %s1616 = scalar_lea.sflag [#allocation5], %s1615
        %s1617 = sand.u32 %s100, 1
        %s1618 = smul.addr %s1617, 128
        %s1619 = scalar_lea.vmem [#allocation8], %s1618
        %s1620 = sand.u32 %s26, 1
        %s1621 = scalar_lea.sflag [#allocation10], %s1620
        %s1622 = sand.u32 %s126, 1
        %s1623 = scalar_lea.vmem [#allocation9], %s1622
        %s1624 = sand.u32 %s26, 1
        %s1625 = scalar_lea.sflag [#allocation10], %s1624
        %s1626 = sand.u32 %s152, 1
        %s1627 = scalar_lea.vmem [#allocation11], %s1626
        // Predicated region
        $region45: #{tpu_custom_call.1} parent=27 // pred_check
          %p1628 = pneg %p110
        $region46: #{tpu_custom_call.1} parent=27 // pred_check_branch
          %1630 = sbr.rel (%p1628) target = $region48
        $region47: #{tpu_custom_call.1} parent=27 // pred_region
          %s1631 = smul.u32 32, %s30
          %1633 = vsyncadd %s1616, 0
          %s1634 = smul.addr %s1631, 4
          %s1635 = scalar_lea.hbm %s2, %s1634
          %s1636 = sshll.u32 %s1619, 4
          %s1637 = int_to_ptr.vmem [resolvable:$true] %s1636
          %s1638 = sshll.u32 %s1635, 4
          %s1639 = int_to_ptr.hbm [resolvable:$true] %s1638
          %1644 = dma.vmem_to_hbm [thread:$0]  %s1637, 2048, %s1639, %s1616, 64, 64, 4
        $region48: #{tpu_custom_call.1} parent=27 // pred_fallthru
          _
        // Predicated region
        $region49: #{tpu_custom_call.1} parent=27 // pred_check
          %p1645 = pneg %p136
        $region50: #{tpu_custom_call.1} parent=27 // pred_check_branch
          %1647 = sbr.rel (%p1645) target = $region52
        $region51: #{tpu_custom_call.1} parent=27 // pred_region
          %1649 = vsyncadd %s1621, 0
          %s1650 = scalar_lea.hbm %s3, %s30
          %s1652 = sshll.u32 %s1623, 4
          %s1653 = int_to_ptr.vmem [resolvable:$true] %s1652
          %s1654 = sshll.u32 %s1650, 4
          %s1655 = int_to_ptr.hbm [resolvable:$true] %s1654
          %1657 = dma.vmem_to_hbm [thread:$0]  %s1653, 16, %s1655, %s1621
        $region52: #{tpu_custom_call.1} parent=27 // pred_fallthru
          _
        // Predicated region
        $region53: #{tpu_custom_call.1} parent=27 // pred_check
          %p1658 = pneg %p162
        $region54: #{tpu_custom_call.1} parent=27 // pred_check_branch
          %1660 = sbr.rel (%p1658) target = $region56
        $region55: #{tpu_custom_call.1} parent=27 // pred_region
          %1662 = vsyncadd %s1625, 0
          %s1663 = scalar_lea.hbm %s4, %s30
          %s1665 = sshll.u32 %s1627, 4
          %s1666 = int_to_ptr.vmem [resolvable:$true] %s1665
          %s1667 = sshll.u32 %s1663, 4
          %s1668 = int_to_ptr.hbm [resolvable:$true] %s1667
          %1670 = dma.vmem_to_hbm [thread:$0]  %s1666, 16, %s1668, %s1625
        $region56: #{tpu_custom_call.1} parent=27 // pred_fallthru
          _
      $region28: #{tpu_custom_call.1} parent=5 // pred_fallthru
        _
      %p1671 = scmp.le.s32.totalorder 2, %s21
      // Predicated region
      $region57: #{tpu_custom_call.1} parent=5 // pred_check
        %p1672 = pneg %p1671
      $region58: #{tpu_custom_call.1} parent=5 // pred_check_branch
        %1674 = sbr.rel (%p1672) target = $region60
      $region59: #{tpu_custom_call.1} parent=5 // pred_region
        %s1675 = ssub.s32 %s21, 2
        // Predicated region
        $region61: #{tpu_custom_call.1} parent=59 // pred_check
          %p1676 = pneg %p116
        $region62: #{tpu_custom_call.1} parent=59 // pred_check_branch
          %1678 = sbr.rel (%p1676) target = $region64
        $region63: #{tpu_custom_call.1} parent=59 // pred_region
          %s1679 = sand.u32 %s101, 1
          %s1680 = scalar_lea.sflag [#allocation5], %s1679
          %s1681 = sand.u32 %s101, 1
          %s1682 = smul.addr %s1681, 128
          %s1683 = scalar_lea.vmem [#allocation8], %s1682
          %1685 = dma.done %s1680, 2048
        $region64: #{tpu_custom_call.1} parent=59 // pred_fallthru
          _
        // Predicated region
        $region65: #{tpu_custom_call.1} parent=59 // pred_check
          %p1686 = pneg %p142
        $region66: #{tpu_custom_call.1} parent=59 // pred_check_branch
          %1688 = sbr.rel (%p1686) target = $region68
        $region67: #{tpu_custom_call.1} parent=59 // pred_region
          %s1689 = sand.u32 %s27, 1
          %s1690 = scalar_lea.sflag [#allocation10], %s1689
          %s1691 = sand.u32 %s127, 1
          %s1692 = scalar_lea.vmem [#allocation9], %s1691
          %1694 = dma.done %s1690, 16
        $region68: #{tpu_custom_call.1} parent=59 // pred_fallthru
          _
        // Predicated region
        $region69: #{tpu_custom_call.1} parent=59 // pred_check
          %p1695 = pneg %p168
        $region70: #{tpu_custom_call.1} parent=59 // pred_check_branch
          %1697 = sbr.rel (%p1695) target = $region72
        $region71: #{tpu_custom_call.1} parent=59 // pred_region
          %s1698 = sand.u32 %s27, 1
          %s1699 = scalar_lea.sflag [#allocation10], %s1698
          %s1700 = sand.u32 %s153, 1
          %s1701 = scalar_lea.vmem [#allocation11], %s1700
          %1703 = dma.done %s1699, 16
        $region72: #{tpu_custom_call.1} parent=59 // pred_fallthru
          _
      $region60: #{tpu_custom_call.1} parent=5 // pred_fallthru
        _
    $region6: #{tpu_custom_call.1} parent=1 // loop_footer
      %s25 = sadd.s32 1, %s21
    $region7: #{tpu_custom_call.1} parent=1 // loop_footer_branch
      %20 = sbr.rel target = $region3
    $region8: #{tpu_custom_call.1} parent=1 // loop_exit
      _
    %1704 = vsyncpa [#allocation4], 1
    %s1705 = scalar_lea.sflag [#allocation4], 1
    %1706 = vsyncpa %s1705, 1
    %1707 = vsyncpa [#allocation7], 1
    %1708 = vsyncpa [#allocation5], 1
    %s1709 = scalar_lea.sflag [#allocation5], 1
    %1710 = vsyncpa %s1709, 1
    %1711 = vsyncpa [#allocation10], 1
    %s1712 = scalar_lea.sflag [#allocation10], 1
    %1713 = vsyncpa %s1712, 1

</llo_original>
